<compile_context>
chip_gen: v7x
topology: tpu7x:2x2x1
jax: 0.10.0
libtpu: 0.0.40
codegen_flags: <defaults>
</compile_context>

<pallas_src>
import math

import jax
import jax.numpy as jnp
from jax.experimental import pallas as pl
from jax.experimental.pallas import tpu as pltpu


_MAX_SUBCHUNKS = 8    # bound on statically-unrolled B*C sub-chunks per grid step
_UNROLL_ROWS = 32     # kh-window rows unrolled; larger windows use fori_loop


def _round_up(x, m):
    return (x + m - 1) // m * m


def _pool_geometry(in_h, in_w, scale):
    """Mirror PyTorch's kernel/stride/pad/out-size arithmetic exactly."""
    kh = int(math.ceil(in_h / scale))
    kw = int(math.ceil(in_w / scale))
    ph = int((kh * scale - in_h + 1) / 2)
    pw = int((kw * scale - in_w + 1) / 2)
    out_h = (in_h + 2 * ph - kh) // kh + 1   # MaxPool2d floor formula, stride == kernel
    out_w = (in_w + 2 * pw - kw) // kw + 1
    # Same legality check torch.nn.MaxPool2d enforces (pad <= kernel/2).  It also
    # guarantees every pooling window overlaps the valid region, which makes the
    # in-kernel "clip the window" strategy exactly equivalent to -inf padding.
    if 2 * ph > kh or 2 * pw > kw or out_h < 1 or out_w < 1:
        raise ValueError(f"invalid SPP scale {scale} for input {in_h}x{in_w}")
    return kh, kw, ph, pw, out_h, out_w


def _vmem_capacity_bytes():
    try:
        return int(pltpu.get_tpu_info().vmem_capacity_bytes)
    except Exception:
        return 64 * 1024 * 1024   # conservative default (v7x per-core VMEM)


def _choose_tiling(bc, h, w, itemsize, vmem_cap):
    """Pick (bc_tile, sub): rows per grid block and rows per in-kernel sub-chunk."""
    # VMEM footprint of one (H, W) plane after (8, 128) tile padding.
    padded_plane = _round_up(h, 8) * _round_up(w, 128) * itemsize
    budget = vmem_cap // 4                       # double-buffered input stays well clear
    max_bc_vmem = budget // (2 * padded_plane)
    if max_bc_vmem < min(bc, 8):
        # TODO(synk): add an H-chunk grid axis ('arbitrary') with a running-max
        # accumulator for spatial planes too large for VMEM; fail loudly for now.
        raise ValueError(f"spatial plane {h}x{w} too large for VMEM ({vmem_cap} bytes)")
    # vreg pressure: per-sub-chunk working set is ~3 values of shape (sub, W);
    # keep a (sub, W) band at <= ~16 vregs (sized at 32-bit, safe for bf16 on v5e).
    lane_tiles = -(-w // 128)
    sub_cap = max(8, (128 // lane_tiles) // 8 * 8)
    cap = max(8, min(max_bc_vmem, sub_cap * _MAX_SUBCHUNKS, 1024) // 8 * 8)

    if bc % 8 != 0 or bc <= 8:
        # Odd / tiny B*C: one full block (block dim == full array dim is always legal).
        if bc > max_bc_vmem:
            raise ValueError("B*C is not a multiple of 8 and does not fit one VMEM block")
        bc_tile = bc
    else:
        cands = [t for t in range(8, min(cap, bc) + 1, 8) if bc % t == 0]
        # Prefer >= 2 grid blocks so both of v7x's TensorCores (and both HBM
        # paths) are used whenever B*C allows it; also lets DMA/compute overlap.
        half = [t for t in cands if t <= bc // 2]
        bc_tile = max(half) if half else max(cands)
    sub = min(sub_cap, bc_tile)
    return bc_tile, sub


def _make_spp_kernel(in_h, in_w, geoms, bc_tile, sub, dtype):
    """One fused kernel covering every pyramid scale; all indices are static.

    Clipping each window to the valid region is equivalent to -inf padding under
    a max reduction (every window overlaps the valid region; see _pool_geometry).
    """
    if jnp.issubdtype(jnp.dtype(dtype), jnp.floating):
        neg_fill = -jnp.inf
    else:
        neg_fill = int(jnp.iinfo(jnp.dtype(dtype)).min)
    chunk_starts = list(range(0, bc_tile, sub))

    def kernel(x_ref, o_ref):
        # x_ref: (bc_tile, H, W)  -- H on sublanes, W on lanes
        # o_ref: (bc_tile, total_cols)
        # Hoisted once (JAX does not CSE broadcast/iota inside loops).
        lane_idx = jax.lax.broadcasted_iota(jnp.int32, (1, in_w), 1)

        # Static sub-chunk loop: bounds the vreg-live working set to ~(sub, W)
        # values while the grid block (the DMA unit) stays large.
        for c0 in chunk_starts:
            c1 = min(c0 + sub, bc_tile)
            col_off = 0
            for (kh, kw, ph, pw, out_h, out_w) in geoms:
                for oh in range(out_h):
                    hs = max(oh * kh - ph, 0)
                    he = min(oh * kh - ph + kh, in_h)
                    nrows = he - hs
                    # kh-window reduce over rows: elementwise VPU maxima, only
                    # one (rows, W) band live at a time.
                    if nrows <= _UNROLL_ROWS:
                        band = x_ref[c0:c1, hs, :]
                        for hh in range(hs + 1, he):
                            band = jnp.maximum(band, x_ref[c0:c1, hh, :])
                    else:
                        band = jax.lax.fori_loop(
                            hs + 1, he,
                            lambda hh, acc: jnp.maximum(acc, x_ref[c0:c1, hh, :]),
                            x_ref[c0:c1, hs, :])
                    # kw-window reduce: masked full-width lane max (no unaligned
                    # lane slices); one small XLU reduce per output position.
                    cols = []
                    for ow in range(out_w):
                        ws = max(ow * kw - pw, 0)
                        we = min(ow * kw - pw + kw, in_w)
                        if ws == 0 and we == in_w:
                            v = band
                        else:
                            m = (lane_idx >= ws) & (lane_idx < we)
                            v = jnp.where(m, band, neg_fill)
                        cols.append(jnp.max(v, axis=-1, keepdims=True))
                    # Stream one (rows, out_w) slab per band with static offsets:
                    # bounded live set, no end-of-kernel concatenate.
                    o_ref[c0:c1, col_off:col_off + out_w] = jnp.concatenate(cols, axis=-1)
                    col_off += out_w

    return kernel


def spp_layer(x_nchw, scale_list):
    B, C, H, W = x_nchw.shape
    BC = B * C
    dtype = x_nchw.dtype
    itemsize = jnp.dtype(dtype).itemsize

    geoms = [_pool_geometry(H, W, s) for s in scale_list]
    per_scale_cols = [oh * ow for (_, _, _, _, oh, ow) in geoms]
    total_cols = sum(per_scale_cols)

    vmem_cap = _vmem_capacity_bytes()
    bc_tile, sub = _choose_tiling(BC, H, W, itemsize, vmem_cap)
    grid = (BC // bc_tile,)

    # Free reshape (NCHW is already contiguous as (B*C, H, W)): no extra HBM
    # traffic, and every grid block is one contiguous HBM region.
    x_bc = x_nchw.reshape(BC, H, W)

    kernel = _make_spp_kernel(H, W, geoms, bc_tile, sub, dtype)

    flops = 2 * len(scale_list) * BC * H * W            # ~compares per element per scale
    bytes_accessed = BC * H * W * itemsize + BC * total_cols * itemsize
    cost = pl.CostEstimate(flops=flops, transcendentals=0,
                           bytes_accessed=int(bytes_accessed))

    pooled = pl.pallas_call(
        kernel,
        out_shape=jax.ShapeDtypeStruct((BC, total_cols), dtype),
        grid=grid,
        in_specs=[pl.BlockSpec((bc_tile, H, W), lambda i: (i, 0, 0))],
        out_specs=pl.BlockSpec((bc_tile, total_cols), lambda i: (i, 0)),
        compiler_params=pltpu.CompilerParams(
            dimension_semantics=("parallel",),
            vmem_limit_bytes=int(vmem_cap // 2)),
        cost_estimate=cost,
    )(x_bc)

    # (B*C, total_cols) -> (B, sum_s C*out_h_s*out_w_s), matching torch's
    # cat([maxpool_s(x).view(B, -1) for s in scales], dim=1): per scale the
    # flattened per-batch order is (c, oh, ow).  Tiny tensor, negligible cost.
    pooled = pooled.reshape(B, C, total_cols)
    pieces, off = [], 0
    for p in per_scale_cols:
        pieces.append(pooled[:, :, off:off + p].reshape(B, C * p))
        off += p
    return jnp.concatenate(pieces, axis=1)


def _reference_spp(x, scale_list):
    """Pure-JAX reference using lax.reduce_window (matches torch MaxPool2d)."""
    B, C, H, W = x.shape
    outs = []
    for s in scale_list:
        kh, kw, ph, pw, _, _ = _pool_geometry(H, W, s)
        pooled = jax.lax.reduce_window(
            x, -jnp.inf, jax.lax.max,
            window_dimensions=(1, 1, kh, kw),
            window_strides=(1, 1, kh, kw),
            padding=((0, 0), (0, 0), (ph, ph), (pw, pw)))
        outs.append(pooled.reshape(B, -1))
    return jnp.concatenate(outs, axis=1)


if __name__ == "__main__":
    key = jax.random.PRNGKey(0)
    B, C, H, W = 2, 4, 16, 16
    x = jax.random.normal(key, (B, C, H, W), dtype=jnp.float32)

    scale_list = [1, 2, 3, 4]  # scale 3 exercises the padding path

    out = jax.block_until_ready(spp_layer(x, scale_list))

    expected_cols = sum(
        C * oh * ow
        for (_, _, _, _, oh, ow) in (_pool_geometry(H, W, s) for s in scale_list)
    )
    assert out.shape == (B, expected_cols), out.shape

    ref = _reference_spp(x, scale_list)
    # Max pooling is exact -> demand exact equality.
    assert bool(jnp.array_equal(out, ref)), "Pallas SPP mismatch vs reference"

    print("KERNEL_OK")
</pallas_src>

<mosaic_0001>
module attributes {stable_mosaic.version = 11 : i64} {
  func.func @kernel(%arg0: i32, %arg1: memref<8x16x16xf32, #tpu.memory_space<vmem>>, %arg2: memref<8x30xf32, #tpu.memory_space<vmem>>) attributes {dimension_semantics = [#tpu.dimension_semantics<parallel>], iteration_bounds = array<i64: 1>, scalar_prefetch = 0 : i64, scratch_operands = 0 : i64, tpu.core_type = #tpu.core_type<tc>, window_params = [{transform_indices = @transform_0, window_bounds = array<i64: 8, 16, 16>}, {transform_indices = @transform_1, window_bounds = array<i64: 8, 30>}]} {
    %0 = tpu.iota {dimensions = array<i32: 1>} : vector<1x16xi32>
    %c0 = arith.constant 0 : index
    %c0_0 = arith.constant 0 : index
    %c0_1 = arith.constant 0 : index
    %1 = vector.load %arg1[%c0, %c0_0, %c0_1] : memref<8x16x16xf32, #tpu.memory_space<vmem>>, vector<8x1x16xf32>
    %2 = vector.shape_cast %1 : vector<8x1x16xf32> to vector<8x16xf32>
    %c0_2 = arith.constant 0 : index
    %c1 = arith.constant 1 : index
    %c0_3 = arith.constant 0 : index
    %3 = vector.load %arg1[%c0_2, %c1, %c0_3] : memref<8x16x16xf32, #tpu.memory_space<vmem>>, vector<8x1x16xf32>
    %4 = vector.shape_cast %3 : vector<8x1x16xf32> to vector<8x16xf32>
    %5 = arith.maximumf %2, %4 : vector<8x16xf32>
    %c0_4 = arith.constant 0 : index
    %c2 = arith.constant 2 : index
    %c0_5 = arith.constant 0 : index
    %6 = vector.load %arg1[%c0_4, %c2, %c0_5] : memref<8x16x16xf32, #tpu.memory_space<vmem>>, vector<8x1x16xf32>
    %7 = vector.shape_cast %6 : vector<8x1x16xf32> to vector<8x16xf32>
    %8 = arith.maximumf %5, %7 : vector<8x16xf32>
    %c0_6 = arith.constant 0 : index
    %c3 = arith.constant 3 : index
    %c0_7 = arith.constant 0 : index
    %9 = vector.load %arg1[%c0_6, %c3, %c0_7] : memref<8x16x16xf32, #tpu.memory_space<vmem>>, vector<8x1x16xf32>
    %10 = vector.shape_cast %9 : vector<8x1x16xf32> to vector<8x16xf32>
    %11 = arith.maximumf %8, %10 : vector<8x16xf32>
    %c0_8 = arith.constant 0 : index
    %c4 = arith.constant 4 : index
    %c0_9 = arith.constant 0 : index
    %12 = vector.load %arg1[%c0_8, %c4, %c0_9] : memref<8x16x16xf32, #tpu.memory_space<vmem>>, vector<8x1x16xf32>
    %13 = vector.shape_cast %12 : vector<8x1x16xf32> to vector<8x16xf32>
    %14 = arith.maximumf %11, %13 : vector<8x16xf32>
    %c0_10 = arith.constant 0 : index
    %c5 = arith.constant 5 : index
    %c0_11 = arith.constant 0 : index
    %15 = vector.load %arg1[%c0_10, %c5, %c0_11] : memref<8x16x16xf32, #tpu.memory_space<vmem>>, vector<8x1x16xf32>
    %16 = vector.shape_cast %15 : vector<8x1x16xf32> to vector<8x16xf32>
    %17 = arith.maximumf %14, %16 : vector<8x16xf32>
    %c0_12 = arith.constant 0 : index
    %c6 = arith.constant 6 : index
    %c0_13 = arith.constant 0 : index
    %18 = vector.load %arg1[%c0_12, %c6, %c0_13] : memref<8x16x16xf32, #tpu.memory_space<vmem>>, vector<8x1x16xf32>
    %19 = vector.shape_cast %18 : vector<8x1x16xf32> to vector<8x16xf32>
    %20 = arith.maximumf %17, %19 : vector<8x16xf32>
    %c0_14 = arith.constant 0 : index
    %c7 = arith.constant 7 : index
    %c0_15 = arith.constant 0 : index
    %21 = vector.load %arg1[%c0_14, %c7, %c0_15] : memref<8x16x16xf32, #tpu.memory_space<vmem>>, vector<8x1x16xf32>
    %22 = vector.shape_cast %21 : vector<8x1x16xf32> to vector<8x16xf32>
    %23 = arith.maximumf %20, %22 : vector<8x16xf32>
    %c0_16 = arith.constant 0 : index
    %c8 = arith.constant 8 : index
    %c0_17 = arith.constant 0 : index
    %24 = vector.load %arg1[%c0_16, %c8, %c0_17] : memref<8x16x16xf32, #tpu.memory_space<vmem>>, vector<8x1x16xf32>
    %25 = vector.shape_cast %24 : vector<8x1x16xf32> to vector<8x16xf32>
    %26 = arith.maximumf %23, %25 : vector<8x16xf32>
    %c0_18 = arith.constant 0 : index
    %c9 = arith.constant 9 : index
    %c0_19 = arith.constant 0 : index
    %27 = vector.load %arg1[%c0_18, %c9, %c0_19] : memref<8x16x16xf32, #tpu.memory_space<vmem>>, vector<8x1x16xf32>
    %28 = vector.shape_cast %27 : vector<8x1x16xf32> to vector<8x16xf32>
    %29 = arith.maximumf %26, %28 : vector<8x16xf32>
    %c0_20 = arith.constant 0 : index
    %c10 = arith.constant 10 : index
    %c0_21 = arith.constant 0 : index
    %30 = vector.load %arg1[%c0_20, %c10, %c0_21] : memref<8x16x16xf32, #tpu.memory_space<vmem>>, vector<8x1x16xf32>
    %31 = vector.shape_cast %30 : vector<8x1x16xf32> to vector<8x16xf32>
    %32 = arith.maximumf %29, %31 : vector<8x16xf32>
    %c0_22 = arith.constant 0 : index
    %c11 = arith.constant 11 : index
    %c0_23 = arith.constant 0 : index
    %33 = vector.load %arg1[%c0_22, %c11, %c0_23] : memref<8x16x16xf32, #tpu.memory_space<vmem>>, vector<8x1x16xf32>
    %34 = vector.shape_cast %33 : vector<8x1x16xf32> to vector<8x16xf32>
    %35 = arith.maximumf %32, %34 : vector<8x16xf32>
    %c0_24 = arith.constant 0 : index
    %c12 = arith.constant 12 : index
    %c0_25 = arith.constant 0 : index
    %36 = vector.load %arg1[%c0_24, %c12, %c0_25] : memref<8x16x16xf32, #tpu.memory_space<vmem>>, vector<8x1x16xf32>
    %37 = vector.shape_cast %36 : vector<8x1x16xf32> to vector<8x16xf32>
    %38 = arith.maximumf %35, %37 : vector<8x16xf32>
    %c0_26 = arith.constant 0 : index
    %c13 = arith.constant 13 : index
    %c0_27 = arith.constant 0 : index
    %39 = vector.load %arg1[%c0_26, %c13, %c0_27] : memref<8x16x16xf32, #tpu.memory_space<vmem>>, vector<8x1x16xf32>
    %40 = vector.shape_cast %39 : vector<8x1x16xf32> to vector<8x16xf32>
    %41 = arith.maximumf %38, %40 : vector<8x16xf32>
    %c0_28 = arith.constant 0 : index
    %c14 = arith.constant 14 : index
    %c0_29 = arith.constant 0 : index
    %42 = vector.load %arg1[%c0_28, %c14, %c0_29] : memref<8x16x16xf32, #tpu.memory_space<vmem>>, vector<8x1x16xf32>
    %43 = vector.shape_cast %42 : vector<8x1x16xf32> to vector<8x16xf32>
    %44 = arith.maximumf %41, %43 : vector<8x16xf32>
    %c0_30 = arith.constant 0 : index
    %c15 = arith.constant 15 : index
    %c0_31 = arith.constant 0 : index
    %45 = vector.load %arg1[%c0_30, %c15, %c0_31] : memref<8x16x16xf32, #tpu.memory_space<vmem>>, vector<8x1x16xf32>
    %46 = vector.shape_cast %45 : vector<8x1x16xf32> to vector<8x16xf32>
    %47 = arith.maximumf %44, %46 : vector<8x16xf32>
    %cst = arith.constant dense<0xFF800000> : vector<8xf32>
    %48 = vector.multi_reduction <maximumf>, %47, %cst [1] : vector<8x16xf32> to vector<8xf32>
    %49 = vector.shape_cast %48 : vector<8xf32> to vector<8x1xf32>
    %c0_32 = arith.constant 0 : index
    %c0_33 = arith.constant 0 : index
    %50 = vector.load %arg2[%c0_32, %c0_33] : memref<8x30xf32, #tpu.memory_space<vmem>>, vector<8x1xf32>
    tpu.vector_store %arg2[%c0_32, %c0_33], %49 {strides = array<i32>} : memref<8x30xf32, #tpu.memory_space<vmem>>, vector<8x1xf32>,
    %c0_34 = arith.constant 0 : index
    %c0_35 = arith.constant 0 : index
    %c0_36 = arith.constant 0 : index
    %51 = vector.load %arg1[%c0_34, %c0_35, %c0_36] : memref<8x16x16xf32, #tpu.memory_space<vmem>>, vector<8x1x16xf32>
    %52 = vector.shape_cast %51 : vector<8x1x16xf32> to vector<8x16xf32>
    %c0_37 = arith.constant 0 : index
    %c1_38 = arith.constant 1 : index
    %c0_39 = arith.constant 0 : index
    %53 = vector.load %arg1[%c0_37, %c1_38, %c0_39] : memref<8x16x16xf32, #tpu.memory_space<vmem>>, vector<8x1x16xf32>
    %54 = vector.shape_cast %53 : vector<8x1x16xf32> to vector<8x16xf32>
    %55 = arith.maximumf %52, %54 : vector<8x16xf32>
    %c0_40 = arith.constant 0 : index
    %c2_41 = arith.constant 2 : index
    %c0_42 = arith.constant 0 : index
    %56 = vector.load %arg1[%c0_40, %c2_41, %c0_42] : memref<8x16x16xf32, #tpu.memory_space<vmem>>, vector<8x1x16xf32>
    %57 = vector.shape_cast %56 : vector<8x1x16xf32> to vector<8x16xf32>
    %58 = arith.maximumf %55, %57 : vector<8x16xf32>
    %c0_43 = arith.constant 0 : index
    %c3_44 = arith.constant 3 : index
    %c0_45 = arith.constant 0 : index
    %59 = vector.load %arg1[%c0_43, %c3_44, %c0_45] : memref<8x16x16xf32, #tpu.memory_space<vmem>>, vector<8x1x16xf32>
    %60 = vector.shape_cast %59 : vector<8x1x16xf32> to vector<8x16xf32>
    %61 = arith.maximumf %58, %60 : vector<8x16xf32>
    %c0_46 = arith.constant 0 : index
    %c4_47 = arith.constant 4 : index
    %c0_48 = arith.constant 0 : index
    %62 = vector.load %arg1[%c0_46, %c4_47, %c0_48] : memref<8x16x16xf32, #tpu.memory_space<vmem>>, vector<8x1x16xf32>
    %63 = vector.shape_cast %62 : vector<8x1x16xf32> to vector<8x16xf32>
    %64 = arith.maximumf %61, %63 : vector<8x16xf32>
    %c0_49 = arith.constant 0 : index
    %c5_50 = arith.constant 5 : index
    %c0_51 = arith.constant 0 : index
    %65 = vector.load %arg1[%c0_49, %c5_50, %c0_51] : memref<8x16x16xf32, #tpu.memory_space<vmem>>, vector<8x1x16xf32>
    %66 = vector.shape_cast %65 : vector<8x1x16xf32> to vector<8x16xf32>
    %67 = arith.maximumf %64, %66 : vector<8x16xf32>
    %c0_52 = arith.constant 0 : index
    %c6_53 = arith.constant 6 : index
    %c0_54 = arith.constant 0 : index
    %68 = vector.load %arg1[%c0_52, %c6_53, %c0_54] : memref<8x16x16xf32, #tpu.memory_space<vmem>>, vector<8x1x16xf32>
    %69 = vector.shape_cast %68 : vector<8x1x16xf32> to vector<8x16xf32>
    %70 = arith.maximumf %67, %69 : vector<8x16xf32>
    %c0_55 = arith.constant 0 : index
    %c7_56 = arith.constant 7 : index
    %c0_57 = arith.constant 0 : index
    %71 = vector.load %arg1[%c0_55, %c7_56, %c0_57] : memref<8x16x16xf32, #tpu.memory_space<vmem>>, vector<8x1x16xf32>
    %72 = vector.shape_cast %71 : vector<8x1x16xf32> to vector<8x16xf32>
    %73 = arith.maximumf %70, %72 : vector<8x16xf32>
    %c0_i32 = arith.constant 0 : i32
    %74 = vector.broadcast %c0_i32 : i32 to vector<1x16xi32>
    %75 = arith.cmpi sge, %0, %74 : vector<1x16xi32>
    %c8_i32 = arith.constant 8 : i32
    %76 = vector.broadcast %c8_i32 : i32 to vector<1x16xi32>
    %77 = arith.cmpi slt, %0, %76 : vector<1x16xi32>
    %78 = arith.andi %75, %77 : vector<1x16xi1>
    %cst_58 = arith.constant 0xFF800000 : f32
    %79 = vector.shape_cast %78 : vector<1x16xi1> to vector<1x16xi1>
    %80 = vector.broadcast %79 : vector<1x16xi1> to vector<8x16xi1>
    %81 = vector.broadcast %cst_58 : f32 to vector<8x16xf32>
    %82 = arith.select %80, %73, %81 : vector<8x16xi1>, vector<8x16xf32>
    %cst_59 = arith.constant dense<0xFF800000> : vector<8xf32>
    %83 = vector.multi_reduction <maximumf>, %82, %cst_59 [1] : vector<8x16xf32> to vector<8xf32>
    %84 = vector.shape_cast %83 : vector<8xf32> to vector<8x1xf32>
    %c8_i32_60 = arith.constant 8 : i32
    %85 = vector.broadcast %c8_i32_60 : i32 to vector<1x16xi32>
    %86 = arith.cmpi sge, %0, %85 : vector<1x16xi32>
    %c16_i32 = arith.constant 16 : i32
    %87 = vector.broadcast %c16_i32 : i32 to vector<1x16xi32>
    %88 = arith.cmpi slt, %0, %87 : vector<1x16xi32>
    %89 = arith.andi %86, %88 : vector<1x16xi1>
    %cst_61 = arith.constant 0xFF800000 : f32
    %90 = vector.shape_cast %89 : vector<1x16xi1> to vector<1x16xi1>
    %91 = vector.broadcast %90 : vector<1x16xi1> to vector<8x16xi1>
    %92 = vector.broadcast %cst_61 : f32 to vector<8x16xf32>
    %93 = arith.select %91, %73, %92 : vector<8x16xi1>, vector<8x16xf32>
    %cst_62 = arith.constant dense<0xFF800000> : vector<8xf32>
    %94 = vector.multi_reduction <maximumf>, %93, %cst_62 [1] : vector<8x16xf32> to vector<8xf32>
    %95 = vector.shape_cast %94 : vector<8xf32> to vector<8x1xf32>
    %96 = tpu.concatenate %84, %95 in 1 : vector<8x1xf32>, vector<8x1xf32> -> vector<8x2xf32>
    %c0_63 = arith.constant 0 : index
    %c1_64 = arith.constant 1 : index
    %97 = vector.load %arg2[%c0_63, %c1_64] : memref<8x30xf32, #tpu.memory_space<vmem>>, vector<8x2xf32>
    tpu.vector_store %arg2[%c0_63, %c1_64], %96 {strides = array<i32>} : memref<8x30xf32, #tpu.memory_space<vmem>>, vector<8x2xf32>,
    %c0_65 = arith.constant 0 : index
    %c8_66 = arith.constant 8 : index
    %c0_67 = arith.constant 0 : index
    %98 = vector.load %arg1[%c0_65, %c8_66, %c0_67] : memref<8x16x16xf32, #tpu.memory_space<vmem>>, vector<8x1x16xf32>
    %99 = vector.shape_cast %98 : vector<8x1x16xf32> to vector<8x16xf32>
    %c0_68 = arith.constant 0 : index
    %c9_69 = arith.constant 9 : index
    %c0_70 = arith.constant 0 : index
    %100 = vector.load %arg1[%c0_68, %c9_69, %c0_70] : memref<8x16x16xf32, #tpu.memory_space<vmem>>, vector<8x1x16xf32>
    %101 = vector.shape_cast %100 : vector<8x1x16xf32> to vector<8x16xf32>
    %102 = arith.maximumf %99, %101 : vector<8x16xf32>
    %c0_71 = arith.constant 0 : index
    %c10_72 = arith.constant 10 : index
    %c0_73 = arith.constant 0 : index
    %103 = vector.load %arg1[%c0_71, %c10_72, %c0_73] : memref<8x16x16xf32, #tpu.memory_space<vmem>>, vector<8x1x16xf32>
    %104 = vector.shape_cast %103 : vector<8x1x16xf32> to vector<8x16xf32>
    %105 = arith.maximumf %102, %104 : vector<8x16xf32>
    %c0_74 = arith.constant 0 : index
    %c11_75 = arith.constant 11 : index
    %c0_76 = arith.constant 0 : index
    %106 = vector.load %arg1[%c0_74, %c11_75, %c0_76] : memref<8x16x16xf32, #tpu.memory_space<vmem>>, vector<8x1x16xf32>
    %107 = vector.shape_cast %106 : vector<8x1x16xf32> to vector<8x16xf32>
    %108 = arith.maximumf %105, %107 : vector<8x16xf32>
    %c0_77 = arith.constant 0 : index
    %c12_78 = arith.constant 12 : index
    %c0_79 = arith.constant 0 : index
    %109 = vector.load %arg1[%c0_77, %c12_78, %c0_79] : memref<8x16x16xf32, #tpu.memory_space<vmem>>, vector<8x1x16xf32>
    %110 = vector.shape_cast %109 : vector<8x1x16xf32> to vector<8x16xf32>
    %111 = arith.maximumf %108, %110 : vector<8x16xf32>
    %c0_80 = arith.constant 0 : index
    %c13_81 = arith.constant 13 : index
    %c0_82 = arith.constant 0 : index
    %112 = vector.load %arg1[%c0_80, %c13_81, %c0_82] : memref<8x16x16xf32, #tpu.memory_space<vmem>>, vector<8x1x16xf32>
    %113 = vector.shape_cast %112 : vector<8x1x16xf32> to vector<8x16xf32>
    %114 = arith.maximumf %111, %113 : vector<8x16xf32>
    %c0_83 = arith.constant 0 : index
    %c14_84 = arith.constant 14 : index
    %c0_85 = arith.constant 0 : index
    %115 = vector.load %arg1[%c0_83, %c14_84, %c0_85] : memref<8x16x16xf32, #tpu.memory_space<vmem>>, vector<8x1x16xf32>
    %116 = vector.shape_cast %115 : vector<8x1x16xf32> to vector<8x16xf32>
    %117 = arith.maximumf %114, %116 : vector<8x16xf32>
    %c0_86 = arith.constant 0 : index
    %c15_87 = arith.constant 15 : index
    %c0_88 = arith.constant 0 : index
    %118 = vector.load %arg1[%c0_86, %c15_87, %c0_88] : memref<8x16x16xf32, #tpu.memory_space<vmem>>, vector<8x1x16xf32>
    %119 = vector.shape_cast %118 : vector<8x1x16xf32> to vector<8x16xf32>
    %120 = arith.maximumf %117, %119 : vector<8x16xf32>
    %c0_i32_89 = arith.constant 0 : i32
    %121 = vector.broadcast %c0_i32_89 : i32 to vector<1x16xi32>
    %122 = arith.cmpi sge, %0, %121 : vector<1x16xi32>
    %c8_i32_90 = arith.constant 8 : i32
    %123 = vector.broadcast %c8_i32_90 : i32 to vector<1x16xi32>
    %124 = arith.cmpi slt, %0, %123 : vector<1x16xi32>
    %125 = arith.andi %122, %124 : vector<1x16xi1>
    %cst_91 = arith.constant 0xFF800000 : f32
    %126 = vector.shape_cast %125 : vector<1x16xi1> to vector<1x16xi1>
    %127 = vector.broadcast %126 : vector<1x16xi1> to vector<8x16xi1>
    %128 = vector.broadcast %cst_91 : f32 to vector<8x16xf32>
    %129 = arith.select %127, %120, %128 : vector<8x16xi1>, vector<8x16xf32>
    %cst_92 = arith.constant dense<0xFF800000> : vector<8xf32>
    %130 = vector.multi_reduction <maximumf>, %129, %cst_92 [1] : vector<8x16xf32> to vector<8xf32>
    %131 = vector.shape_cast %130 : vector<8xf32> to vector<8x1xf32>
    %c8_i32_93 = arith.constant 8 : i32
    %132 = vector.broadcast %c8_i32_93 : i32 to vector<1x16xi32>
    %133 = arith.cmpi sge, %0, %132 : vector<1x16xi32>
    %c16_i32_94 = arith.constant 16 : i32
    %134 = vector.broadcast %c16_i32_94 : i32 to vector<1x16xi32>
    %135 = arith.cmpi slt, %0, %134 : vector<1x16xi32>
    %136 = arith.andi %133, %135 : vector<1x16xi1>
    %cst_95 = arith.constant 0xFF800000 : f32
    %137 = vector.shape_cast %136 : vector<1x16xi1> to vector<1x16xi1>
    %138 = vector.broadcast %137 : vector<1x16xi1> to vector<8x16xi1>
    %139 = vector.broadcast %cst_95 : f32 to vector<8x16xf32>
    %140 = arith.select %138, %120, %139 : vector<8x16xi1>, vector<8x16xf32>
    %cst_96 = arith.constant dense<0xFF800000> : vector<8xf32>
    %141 = vector.multi_reduction <maximumf>, %140, %cst_96 [1] : vector<8x16xf32> to vector<8xf32>
    %142 = vector.shape_cast %141 : vector<8xf32> to vector<8x1xf32>
    %143 = tpu.concatenate %131, %142 in 1 : vector<8x1xf32>, vector<8x1xf32> -> vector<8x2xf32>
    %c0_97 = arith.constant 0 : index
    %c3_98 = arith.constant 3 : index
    %144 = vector.load %arg2[%c0_97, %c3_98] : memref<8x30xf32, #tpu.memory_space<vmem>>, vector<8x2xf32>
    tpu.vector_store %arg2[%c0_97, %c3_98], %143 {strides = array<i32>} : memref<8x30xf32, #tpu.memory_space<vmem>>, vector<8x2xf32>,
    %c0_99 = arith.constant 0 : index
    %c0_100 = arith.constant 0 : index
    %c0_101 = arith.constant 0 : index
    %145 = vector.load %arg1[%c0_99, %c0_100, %c0_101] : memref<8x16x16xf32, #tpu.memory_space<vmem>>, vector<8x1x16xf32>
    %146 = vector.shape_cast %145 : vector<8x1x16xf32> to vector<8x16xf32>
    %c0_102 = arith.constant 0 : index
    %c1_103 = arith.constant 1 : index
    %c0_104 = arith.constant 0 : index
    %147 = vector.load %arg1[%c0_102, %c1_103, %c0_104] : memref<8x16x16xf32, #tpu.memory_space<vmem>>, vector<8x1x16xf32>
    %148 = vector.shape_cast %147 : vector<8x1x16xf32> to vector<8x16xf32>
    %149 = arith.maximumf %146, %148 : vector<8x16xf32>
    %c0_105 = arith.constant 0 : index
    %c2_106 = arith.constant 2 : index
    %c0_107 = arith.constant 0 : index
    %150 = vector.load %arg1[%c0_105, %c2_106, %c0_107] : memref<8x16x16xf32, #tpu.memory_space<vmem>>, vector<8x1x16xf32>
    %151 = vector.shape_cast %150 : vector<8x1x16xf32> to vector<8x16xf32>
    %152 = arith.maximumf %149, %151 : vector<8x16xf32>
    %c0_108 = arith.constant 0 : index
    %c3_109 = arith.constant 3 : index
    %c0_110 = arith.constant 0 : index
    %153 = vector.load %arg1[%c0_108, %c3_109, %c0_110] : memref<8x16x16xf32, #tpu.memory_space<vmem>>, vector<8x1x16xf32>
    %154 = vector.shape_cast %153 : vector<8x1x16xf32> to vector<8x16xf32>
    %155 = arith.maximumf %152, %154 : vector<8x16xf32>
    %c0_111 = arith.constant 0 : index
    %c4_112 = arith.constant 4 : index
    %c0_113 = arith.constant 0 : index
    %156 = vector.load %arg1[%c0_111, %c4_112, %c0_113] : memref<8x16x16xf32, #tpu.memory_space<vmem>>, vector<8x1x16xf32>
    %157 = vector.shape_cast %156 : vector<8x1x16xf32> to vector<8x16xf32>
    %158 = arith.maximumf %155, %157 : vector<8x16xf32>
    %c0_i32_114 = arith.constant 0 : i32
    %159 = vector.broadcast %c0_i32_114 : i32 to vector<1x16xi32>
    %160 = arith.cmpi sge, %0, %159 : vector<1x16xi32>
    %c5_i32 = arith.constant 5 : i32
    %161 = vector.broadcast %c5_i32 : i32 to vector<1x16xi32>
    %162 = arith.cmpi slt, %0, %161 : vector<1x16xi32>
    %163 = arith.andi %160, %162 : vector<1x16xi1>
    %cst_115 = arith.constant 0xFF800000 : f32
    %164 = vector.shape_cast %163 : vector<1x16xi1> to vector<1x16xi1>
    %165 = vector.broadcast %164 : vector<1x16xi1> to vector<8x16xi1>
    %166 = vector.broadcast %cst_115 : f32 to vector<8x16xf32>
    %167 = arith.select %165, %158, %166 : vector<8x16xi1>, vector<8x16xf32>
    %cst_116 = arith.constant dense<0xFF800000> : vector<8xf32>
    %168 = vector.multi_reduction <maximumf>, %167, %cst_116 [1] : vector<8x16xf32> to vector<8xf32>
    %169 = vector.shape_cast %168 : vector<8xf32> to vector<8x1xf32>
    %c5_i32_117 = arith.constant 5 : i32
    %170 = vector.broadcast %c5_i32_117 : i32 to vector<1x16xi32>
    %171 = arith.cmpi sge, %0, %170 : vector<1x16xi32>
    %c11_i32 = arith.constant 11 : i32
    %172 = vector.broadcast %c11_i32 : i32 to vector<1x16xi32>
    %173 = arith.cmpi slt, %0, %172 : vector<1x16xi32>
    %174 = arith.andi %171, %173 : vector<1x16xi1>
    %cst_118 = arith.constant 0xFF800000 : f32
    %175 = vector.shape_cast %174 : vector<1x16xi1> to vector<1x16xi1>
    %176 = vector.broadcast %175 : vector<1x16xi1> to vector<8x16xi1>
    %177 = vector.broadcast %cst_118 : f32 to vector<8x16xf32>
    %178 = arith.select %176, %158, %177 : vector<8x16xi1>, vector<8x16xf32>
    %cst_119 = arith.constant dense<0xFF800000> : vector<8xf32>
    %179 = vector.multi_reduction <maximumf>, %178, %cst_119 [1] : vector<8x16xf32> to vector<8xf32>
    %180 = vector.shape_cast %179 : vector<8xf32> to vector<8x1xf32>
    %c11_i32_120 = arith.constant 11 : i32
    %181 = vector.broadcast %c11_i32_120 : i32 to vector<1x16xi32>
    %182 = arith.cmpi sge, %0, %181 : vector<1x16xi32>
    %c16_i32_121 = arith.constant 16 : i32
    %183 = vector.broadcast %c16_i32_121 : i32 to vector<1x16xi32>
    %184 = arith.cmpi slt, %0, %183 : vector<1x16xi32>
    %185 = arith.andi %182, %184 : vector<1x16xi1>
    %cst_122 = arith.constant 0xFF800000 : f32
    %186 = vector.shape_cast %185 : vector<1x16xi1> to vector<1x16xi1>
    %187 = vector.broadcast %186 : vector<1x16xi1> to vector<8x16xi1>
    %188 = vector.broadcast %cst_122 : f32 to vector<8x16xf32>
    %189 = arith.select %187, %158, %188 : vector<8x16xi1>, vector<8x16xf32>
    %cst_123 = arith.constant dense<0xFF800000> : vector<8xf32>
    %190 = vector.multi_reduction <maximumf>, %189, %cst_123 [1] : vector<8x16xf32> to vector<8xf32>
    %191 = vector.shape_cast %190 : vector<8xf32> to vector<8x1xf32>
    %192 = tpu.concatenate %169, %180, %191 in 1 : vector<8x1xf32>, vector<8x1xf32>, vector<8x1xf32> -> vector<8x3xf32>
    %c0_124 = arith.constant 0 : index
    %c5_125 = arith.constant 5 : index
    %193 = vector.load %arg2[%c0_124, %c5_125] : memref<8x30xf32, #tpu.memory_space<vmem>>, vector<8x3xf32>
    tpu.vector_store %arg2[%c0_124, %c5_125], %192 {strides = array<i32>} : memref<8x30xf32, #tpu.memory_space<vmem>>, vector<8x3xf32>,
    %c0_126 = arith.constant 0 : index
    %c5_127 = arith.constant 5 : index
    %c0_128 = arith.constant 0 : index
    %194 = vector.load %arg1[%c0_126, %c5_127, %c0_128] : memref<8x16x16xf32, #tpu.memory_space<vmem>>, vector<8x1x16xf32>
    %195 = vector.shape_cast %194 : vector<8x1x16xf32> to vector<8x16xf32>
    %c0_129 = arith.constant 0 : index
    %c6_130 = arith.constant 6 : index
    %c0_131 = arith.constant 0 : index
    %196 = vector.load %arg1[%c0_129, %c6_130, %c0_131] : memref<8x16x16xf32, #tpu.memory_space<vmem>>, vector<8x1x16xf32>
    %197 = vector.shape_cast %196 : vector<8x1x16xf32> to vector<8x16xf32>
    %198 = arith.maximumf %195, %197 : vector<8x16xf32>
    %c0_132 = arith.constant 0 : index
    %c7_133 = arith.constant 7 : index
    %c0_134 = arith.constant 0 : index
    %199 = vector.load %arg1[%c0_132, %c7_133, %c0_134] : memref<8x16x16xf32, #tpu.memory_space<vmem>>, vector<8x1x16xf32>
    %200 = vector.shape_cast %199 : vector<8x1x16xf32> to vector<8x16xf32>
    %201 = arith.maximumf %198, %200 : vector<8x16xf32>
    %c0_135 = arith.constant 0 : index
    %c8_136 = arith.constant 8 : index
    %c0_137 = arith.constant 0 : index
    %202 = vector.load %arg1[%c0_135, %c8_136, %c0_137] : memref<8x16x16xf32, #tpu.memory_space<vmem>>, vector<8x1x16xf32>
    %203 = vector.shape_cast %202 : vector<8x1x16xf32> to vector<8x16xf32>
    %204 = arith.maximumf %201, %203 : vector<8x16xf32>
    %c0_138 = arith.constant 0 : index
    %c9_139 = arith.constant 9 : index
    %c0_140 = arith.constant 0 : index
    %205 = vector.load %arg1[%c0_138, %c9_139, %c0_140] : memref<8x16x16xf32, #tpu.memory_space<vmem>>, vector<8x1x16xf32>
    %206 = vector.shape_cast %205 : vector<8x1x16xf32> to vector<8x16xf32>
    %207 = arith.maximumf %204, %206 : vector<8x16xf32>
    %c0_141 = arith.constant 0 : index
    %c10_142 = arith.constant 10 : index
    %c0_143 = arith.constant 0 : index
    %208 = vector.load %arg1[%c0_141, %c10_142, %c0_143] : memref<8x16x16xf32, #tpu.memory_space<vmem>>, vector<8x1x16xf32>
    %209 = vector.shape_cast %208 : vector<8x1x16xf32> to vector<8x16xf32>
    %210 = arith.maximumf %207, %209 : vector<8x16xf32>
    %c0_i32_144 = arith.constant 0 : i32
    %211 = vector.broadcast %c0_i32_144 : i32 to vector<1x16xi32>
    %212 = arith.cmpi sge, %0, %211 : vector<1x16xi32>
    %c5_i32_145 = arith.constant 5 : i32
    %213 = vector.broadcast %c5_i32_145 : i32 to vector<1x16xi32>
    %214 = arith.cmpi slt, %0, %213 : vector<1x16xi32>
    %215 = arith.andi %212, %214 : vector<1x16xi1>
    %cst_146 = arith.constant 0xFF800000 : f32
    %216 = vector.shape_cast %215 : vector<1x16xi1> to vector<1x16xi1>
    %217 = vector.broadcast %216 : vector<1x16xi1> to vector<8x16xi1>
    %218 = vector.broadcast %cst_146 : f32 to vector<8x16xf32>
    %219 = arith.select %217, %210, %218 : vector<8x16xi1>, vector<8x16xf32>
    %cst_147 = arith.constant dense<0xFF800000> : vector<8xf32>
    %220 = vector.multi_reduction <maximumf>, %219, %cst_147 [1] : vector<8x16xf32> to vector<8xf32>
    %221 = vector.shape_cast %220 : vector<8xf32> to vector<8x1xf32>
    %c5_i32_148 = arith.constant 5 : i32
    %222 = vector.broadcast %c5_i32_148 : i32 to vector<1x16xi32>
    %223 = arith.cmpi sge, %0, %222 : vector<1x16xi32>
    %c11_i32_149 = arith.constant 11 : i32
    %224 = vector.broadcast %c11_i32_149 : i32 to vector<1x16xi32>
    %225 = arith.cmpi slt, %0, %224 : vector<1x16xi32>
    %226 = arith.andi %223, %225 : vector<1x16xi1>
    %cst_150 = arith.constant 0xFF800000 : f32
    %227 = vector.shape_cast %226 : vector<1x16xi1> to vector<1x16xi1>
    %228 = vector.broadcast %227 : vector<1x16xi1> to vector<8x16xi1>
    %229 = vector.broadcast %cst_150 : f32 to vector<8x16xf32>
    %230 = arith.select %228, %210, %229 : vector<8x16xi1>, vector<8x16xf32>
    %cst_151 = arith.constant dense<0xFF800000> : vector<8xf32>
    %231 = vector.multi_reduction <maximumf>, %230, %cst_151 [1] : vector<8x16xf32> to vector<8xf32>
    %232 = vector.shape_cast %231 : vector<8xf32> to vector<8x1xf32>
    %c11_i32_152 = arith.constant 11 : i32
    %233 = vector.broadcast %c11_i32_152 : i32 to vector<1x16xi32>
    %234 = arith.cmpi sge, %0, %233 : vector<1x16xi32>
    %c16_i32_153 = arith.constant 16 : i32
    %235 = vector.broadcast %c16_i32_153 : i32 to vector<1x16xi32>
    %236 = arith.cmpi slt, %0, %235 : vector<1x16xi32>
    %237 = arith.andi %234, %236 : vector<1x16xi1>
    %cst_154 = arith.constant 0xFF800000 : f32
    %238 = vector.shape_cast %237 : vector<1x16xi1> to vector<1x16xi1>
    %239 = vector.broadcast %238 : vector<1x16xi1> to vector<8x16xi1>
    %240 = vector.broadcast %cst_154 : f32 to vector<8x16xf32>
    %241 = arith.select %239, %210, %240 : vector<8x16xi1>, vector<8x16xf32>
    %cst_155 = arith.constant dense<0xFF800000> : vector<8xf32>
    %242 = vector.multi_reduction <maximumf>, %241, %cst_155 [1] : vector<8x16xf32> to vector<8xf32>
    %243 = vector.shape_cast %242 : vector<8xf32> to vector<8x1xf32>
    %244 = tpu.concatenate %221, %232, %243 in 1 : vector<8x1xf32>, vector<8x1xf32>, vector<8x1xf32> -> vector<8x3xf32>
    %c0_156 = arith.constant 0 : index
    %c8_157 = arith.constant 8 : index
    %245 = vector.load %arg2[%c0_156, %c8_157] : memref<8x30xf32, #tpu.memory_space<vmem>>, vector<8x3xf32>
    tpu.vector_store %arg2[%c0_156, %c8_157], %244 {strides = array<i32>} : memref<8x30xf32, #tpu.memory_space<vmem>>, vector<8x3xf32>,
    %c0_158 = arith.constant 0 : index
    %c11_159 = arith.constant 11 : index
    %c0_160 = arith.constant 0 : index
    %246 = vector.load %arg1[%c0_158, %c11_159, %c0_160] : memref<8x16x16xf32, #tpu.memory_space<vmem>>, vector<8x1x16xf32>
    %247 = vector.shape_cast %246 : vector<8x1x16xf32> to vector<8x16xf32>
    %c0_161 = arith.constant 0 : index
    %c12_162 = arith.constant 12 : index
    %c0_163 = arith.constant 0 : index
    %248 = vector.load %arg1[%c0_161, %c12_162, %c0_163] : memref<8x16x16xf32, #tpu.memory_space<vmem>>, vector<8x1x16xf32>
    %249 = vector.shape_cast %248 : vector<8x1x16xf32> to vector<8x16xf32>
    %250 = arith.maximumf %247, %249 : vector<8x16xf32>
    %c0_164 = arith.constant 0 : index
    %c13_165 = arith.constant 13 : index
    %c0_166 = arith.constant 0 : index
    %251 = vector.load %arg1[%c0_164, %c13_165, %c0_166] : memref<8x16x16xf32, #tpu.memory_space<vmem>>, vector<8x1x16xf32>
    %252 = vector.shape_cast %251 : vector<8x1x16xf32> to vector<8x16xf32>
    %253 = arith.maximumf %250, %252 : vector<8x16xf32>
    %c0_167 = arith.constant 0 : index
    %c14_168 = arith.constant 14 : index
    %c0_169 = arith.constant 0 : index
    %254 = vector.load %arg1[%c0_167, %c14_168, %c0_169] : memref<8x16x16xf32, #tpu.memory_space<vmem>>, vector<8x1x16xf32>
    %255 = vector.shape_cast %254 : vector<8x1x16xf32> to vector<8x16xf32>
    %256 = arith.maximumf %253, %255 : vector<8x16xf32>
    %c0_170 = arith.constant 0 : index
    %c15_171 = arith.constant 15 : index
    %c0_172 = arith.constant 0 : index
    %257 = vector.load %arg1[%c0_170, %c15_171, %c0_172] : memref<8x16x16xf32, #tpu.memory_space<vmem>>, vector<8x1x16xf32>
    %258 = vector.shape_cast %257 : vector<8x1x16xf32> to vector<8x16xf32>
    %259 = arith.maximumf %256, %258 : vector<8x16xf32>
    %c0_i32_173 = arith.constant 0 : i32
    %260 = vector.broadcast %c0_i32_173 : i32 to vector<1x16xi32>
    %261 = arith.cmpi sge, %0, %260 : vector<1x16xi32>
    %c5_i32_174 = arith.constant 5 : i32
    %262 = vector.broadcast %c5_i32_174 : i32 to vector<1x16xi32>
    %263 = arith.cmpi slt, %0, %262 : vector<1x16xi32>
    %264 = arith.andi %261, %263 : vector<1x16xi1>
    %cst_175 = arith.constant 0xFF800000 : f32
    %265 = vector.shape_cast %264 : vector<1x16xi1> to vector<1x16xi1>
    %266 = vector.broadcast %265 : vector<1x16xi1> to vector<8x16xi1>
    %267 = vector.broadcast %cst_175 : f32 to vector<8x16xf32>
    %268 = arith.select %266, %259, %267 : vector<8x16xi1>, vector<8x16xf32>
    %cst_176 = arith.constant dense<0xFF800000> : vector<8xf32>
    %269 = vector.multi_reduction <maximumf>, %268, %cst_176 [1] : vector<8x16xf32> to vector<8xf32>
    %270 = vector.shape_cast %269 : vector<8xf32> to vector<8x1xf32>
    %c5_i32_177 = arith.constant 5 : i32
    %271 = vector.broadcast %c5_i32_177 : i32 to vector<1x16xi32>
    %272 = arith.cmpi sge, %0, %271 : vector<1x16xi32>
    %c11_i32_178 = arith.constant 11 : i32
    %273 = vector.broadcast %c11_i32_178 : i32 to vector<1x16xi32>
    %274 = arith.cmpi slt, %0, %273 : vector<1x16xi32>
    %275 = arith.andi %272, %274 : vector<1x16xi1>
    %cst_179 = arith.constant 0xFF800000 : f32
    %276 = vector.shape_cast %275 : vector<1x16xi1> to vector<1x16xi1>
    %277 = vector.broadcast %276 : vector<1x16xi1> to vector<8x16xi1>
    %278 = vector.broadcast %cst_179 : f32 to vector<8x16xf32>
    %279 = arith.select %277, %259, %278 : vector<8x16xi1>, vector<8x16xf32>
    %cst_180 = arith.constant dense<0xFF800000> : vector<8xf32>
    %280 = vector.multi_reduction <maximumf>, %279, %cst_180 [1] : vector<8x16xf32> to vector<8xf32>
    %281 = vector.shape_cast %280 : vector<8xf32> to vector<8x1xf32>
    %c11_i32_181 = arith.constant 11 : i32
    %282 = vector.broadcast %c11_i32_181 : i32 to vector<1x16xi32>
    %283 = arith.cmpi sge, %0, %282 : vector<1x16xi32>
    %c16_i32_182 = arith.constant 16 : i32
    %284 = vector.broadcast %c16_i32_182 : i32 to vector<1x16xi32>
    %285 = arith.cmpi slt, %0, %284 : vector<1x16xi32>
    %286 = arith.andi %283, %285 : vector<1x16xi1>
    %cst_183 = arith.constant 0xFF800000 : f32
    %287 = vector.shape_cast %286 : vector<1x16xi1> to vector<1x16xi1>
    %288 = vector.broadcast %287 : vector<1x16xi1> to vector<8x16xi1>
    %289 = vector.broadcast %cst_183 : f32 to vector<8x16xf32>
    %290 = arith.select %288, %259, %289 : vector<8x16xi1>, vector<8x16xf32>
    %cst_184 = arith.constant dense<0xFF800000> : vector<8xf32>
    %291 = vector.multi_reduction <maximumf>, %290, %cst_184 [1] : vector<8x16xf32> to vector<8xf32>
    %292 = vector.shape_cast %291 : vector<8xf32> to vector<8x1xf32>
    %293 = tpu.concatenate %270, %281, %292 in 1 : vector<8x1xf32>, vector<8x1xf32>, vector<8x1xf32> -> vector<8x3xf32>
    %c0_185 = arith.constant 0 : index
    %c11_186 = arith.constant 11 : index
    %294 = vector.load %arg2[%c0_185, %c11_186] : memref<8x30xf32, #tpu.memory_space<vmem>>, vector<8x3xf32>
    tpu.vector_store %arg2[%c0_185, %c11_186], %293 {strides = array<i32>} : memref<8x30xf32, #tpu.memory_space<vmem>>, vector<8x3xf32>,
    %c0_187 = arith.constant 0 : index
    %c0_188 = arith.constant 0 : index
    %c0_189 = arith.constant 0 : index
    %295 = vector.load %arg1[%c0_187, %c0_188, %c0_189] : memref<8x16x16xf32, #tpu.memory_space<vmem>>, vector<8x1x16xf32>
    %296 = vector.shape_cast %295 : vector<8x1x16xf32> to vector<8x16xf32>
    %c0_190 = arith.constant 0 : index
    %c1_191 = arith.constant 1 : index
    %c0_192 = arith.constant 0 : index
    %297 = vector.load %arg1[%c0_190, %c1_191, %c0_192] : memref<8x16x16xf32, #tpu.memory_space<vmem>>, vector<8x1x16xf32>
    %298 = vector.shape_cast %297 : vector<8x1x16xf32> to vector<8x16xf32>
    %299 = arith.maximumf %296, %298 : vector<8x16xf32>
    %c0_193 = arith.constant 0 : index
    %c2_194 = arith.constant 2 : index
    %c0_195 = arith.constant 0 : index
    %300 = vector.load %arg1[%c0_193, %c2_194, %c0_195] : memref<8x16x16xf32, #tpu.memory_space<vmem>>, vector<8x1x16xf32>
    %301 = vector.shape_cast %300 : vector<8x1x16xf32> to vector<8x16xf32>
    %302 = arith.maximumf %299, %301 : vector<8x16xf32>
    %c0_196 = arith.constant 0 : index
    %c3_197 = arith.constant 3 : index
    %c0_198 = arith.constant 0 : index
    %303 = vector.load %arg1[%c0_196, %c3_197, %c0_198] : memref<8x16x16xf32, #tpu.memory_space<vmem>>, vector<8x1x16xf32>
    %304 = vector.shape_cast %303 : vector<8x1x16xf32> to vector<8x16xf32>
    %305 = arith.maximumf %302, %304 : vector<8x16xf32>
    %c0_i32_199 = arith.constant 0 : i32
    %306 = vector.broadcast %c0_i32_199 : i32 to vector<1x16xi32>
    %307 = arith.cmpi sge, %0, %306 : vector<1x16xi32>
    %c4_i32 = arith.constant 4 : i32
    %308 = vector.broadcast %c4_i32 : i32 to vector<1x16xi32>
    %309 = arith.cmpi slt, %0, %308 : vector<1x16xi32>
    %310 = arith.andi %307, %309 : vector<1x16xi1>
    %cst_200 = arith.constant 0xFF800000 : f32
    %311 = vector.shape_cast %310 : vector<1x16xi1> to vector<1x16xi1>
    %312 = vector.broadcast %311 : vector<1x16xi1> to vector<8x16xi1>
    %313 = vector.broadcast %cst_200 : f32 to vector<8x16xf32>
    %314 = arith.select %312, %305, %313 : vector<8x16xi1>, vector<8x16xf32>
    %cst_201 = arith.constant dense<0xFF800000> : vector<8xf32>
    %315 = vector.multi_reduction <maximumf>, %314, %cst_201 [1] : vector<8x16xf32> to vector<8xf32>
    %316 = vector.shape_cast %315 : vector<8xf32> to vector<8x1xf32>
    %c4_i32_202 = arith.constant 4 : i32
    %317 = vector.broadcast %c4_i32_202 : i32 to vector<1x16xi32>
    %318 = arith.cmpi sge, %0, %317 : vector<1x16xi32>
    %c8_i32_203 = arith.constant 8 : i32
    %319 = vector.broadcast %c8_i32_203 : i32 to vector<1x16xi32>
    %320 = arith.cmpi slt, %0, %319 : vector<1x16xi32>
    %321 = arith.andi %318, %320 : vector<1x16xi1>
    %cst_204 = arith.constant 0xFF800000 : f32
    %322 = vector.shape_cast %321 : vector<1x16xi1> to vector<1x16xi1>
    %323 = vector.broadcast %322 : vector<1x16xi1> to vector<8x16xi1>
    %324 = vector.broadcast %cst_204 : f32 to vector<8x16xf32>
    %325 = arith.select %323, %305, %324 : vector<8x16xi1>, vector<8x16xf32>
    %cst_205 = arith.constant dense<0xFF800000> : vector<8xf32>
    %326 = vector.multi_reduction <maximumf>, %325, %cst_205 [1] : vector<8x16xf32> to vector<8xf32>
    %327 = vector.shape_cast %326 : vector<8xf32> to vector<8x1xf32>
    %c8_i32_206 = arith.constant 8 : i32
    %328 = vector.broadcast %c8_i32_206 : i32 to vector<1x16xi32>
    %329 = arith.cmpi sge, %0, %328 : vector<1x16xi32>
    %c12_i32 = arith.constant 12 : i32
    %330 = vector.broadcast %c12_i32 : i32 to vector<1x16xi32>
    %331 = arith.cmpi slt, %0, %330 : vector<1x16xi32>
    %332 = arith.andi %329, %331 : vector<1x16xi1>
    %cst_207 = arith.constant 0xFF800000 : f32
    %333 = vector.shape_cast %332 : vector<1x16xi1> to vector<1x16xi1>
    %334 = vector.broadcast %333 : vector<1x16xi1> to vector<8x16xi1>
    %335 = vector.broadcast %cst_207 : f32 to vector<8x16xf32>
    %336 = arith.select %334, %305, %335 : vector<8x16xi1>, vector<8x16xf32>
    %cst_208 = arith.constant dense<0xFF800000> : vector<8xf32>
    %337 = vector.multi_reduction <maximumf>, %336, %cst_208 [1] : vector<8x16xf32> to vector<8xf32>
    %338 = vector.shape_cast %337 : vector<8xf32> to vector<8x1xf32>
    %c12_i32_209 = arith.constant 12 : i32
    %339 = vector.broadcast %c12_i32_209 : i32 to vector<1x16xi32>
    %340 = arith.cmpi sge, %0, %339 : vector<1x16xi32>
    %c16_i32_210 = arith.constant 16 : i32
    %341 = vector.broadcast %c16_i32_210 : i32 to vector<1x16xi32>
    %342 = arith.cmpi slt, %0, %341 : vector<1x16xi32>
    %343 = arith.andi %340, %342 : vector<1x16xi1>
    %cst_211 = arith.constant 0xFF800000 : f32
    %344 = vector.shape_cast %343 : vector<1x16xi1> to vector<1x16xi1>
    %345 = vector.broadcast %344 : vector<1x16xi1> to vector<8x16xi1>
    %346 = vector.broadcast %cst_211 : f32 to vector<8x16xf32>
    %347 = arith.select %345, %305, %346 : vector<8x16xi1>, vector<8x16xf32>
    %cst_212 = arith.constant dense<0xFF800000> : vector<8xf32>
    %348 = vector.multi_reduction <maximumf>, %347, %cst_212 [1] : vector<8x16xf32> to vector<8xf32>
    %349 = vector.shape_cast %348 : vector<8xf32> to vector<8x1xf32>
    %350 = tpu.concatenate %316, %327, %338, %349 in 1 : vector<8x1xf32>, vector<8x1xf32>, vector<8x1xf32>, vector<8x1xf32> -> vector<8x4xf32>
    %c0_213 = arith.constant 0 : index
    %c14_214 = arith.constant 14 : index
    %351 = vector.load %arg2[%c0_213, %c14_214] : memref<8x30xf32, #tpu.memory_space<vmem>>, vector<8x4xf32>
    tpu.vector_store %arg2[%c0_213, %c14_214], %350 {strides = array<i32>} : memref<8x30xf32, #tpu.memory_space<vmem>>, vector<8x4xf32>,
    %c0_215 = arith.constant 0 : index
    %c4_216 = arith.constant 4 : index
    %c0_217 = arith.constant 0 : index
    %352 = vector.load %arg1[%c0_215, %c4_216, %c0_217] : memref<8x16x16xf32, #tpu.memory_space<vmem>>, vector<8x1x16xf32>
    %353 = vector.shape_cast %352 : vector<8x1x16xf32> to vector<8x16xf32>
    %c0_218 = arith.constant 0 : index
    %c5_219 = arith.constant 5 : index
    %c0_220 = arith.constant 0 : index
    %354 = vector.load %arg1[%c0_218, %c5_219, %c0_220] : memref<8x16x16xf32, #tpu.memory_space<vmem>>, vector<8x1x16xf32>
    %355 = vector.shape_cast %354 : vector<8x1x16xf32> to vector<8x16xf32>
    %356 = arith.maximumf %353, %355 : vector<8x16xf32>
    %c0_221 = arith.constant 0 : index
    %c6_222 = arith.constant 6 : index
    %c0_223 = arith.constant 0 : index
    %357 = vector.load %arg1[%c0_221, %c6_222, %c0_223] : memref<8x16x16xf32, #tpu.memory_space<vmem>>, vector<8x1x16xf32>
    %358 = vector.shape_cast %357 : vector<8x1x16xf32> to vector<8x16xf32>
    %359 = arith.maximumf %356, %358 : vector<8x16xf32>
    %c0_224 = arith.constant 0 : index
    %c7_225 = arith.constant 7 : index
    %c0_226 = arith.constant 0 : index
    %360 = vector.load %arg1[%c0_224, %c7_225, %c0_226] : memref<8x16x16xf32, #tpu.memory_space<vmem>>, vector<8x1x16xf32>
    %361 = vector.shape_cast %360 : vector<8x1x16xf32> to vector<8x16xf32>
    %362 = arith.maximumf %359, %361 : vector<8x16xf32>
    %c0_i32_227 = arith.constant 0 : i32
    %363 = vector.broadcast %c0_i32_227 : i32 to vector<1x16xi32>
    %364 = arith.cmpi sge, %0, %363 : vector<1x16xi32>
    %c4_i32_228 = arith.constant 4 : i32
    %365 = vector.broadcast %c4_i32_228 : i32 to vector<1x16xi32>
    %366 = arith.cmpi slt, %0, %365 : vector<1x16xi32>
    %367 = arith.andi %364, %366 : vector<1x16xi1>
    %cst_229 = arith.constant 0xFF800000 : f32
    %368 = vector.shape_cast %367 : vector<1x16xi1> to vector<1x16xi1>
    %369 = vector.broadcast %368 : vector<1x16xi1> to vector<8x16xi1>
    %370 = vector.broadcast %cst_229 : f32 to vector<8x16xf32>
    %371 = arith.select %369, %362, %370 : vector<8x16xi1>, vector<8x16xf32>
    %cst_230 = arith.constant dense<0xFF800000> : vector<8xf32>
    %372 = vector.multi_reduction <maximumf>, %371, %cst_230 [1] : vector<8x16xf32> to vector<8xf32>
    %373 = vector.shape_cast %372 : vector<8xf32> to vector<8x1xf32>
    %c4_i32_231 = arith.constant 4 : i32
    %374 = vector.broadcast %c4_i32_231 : i32 to vector<1x16xi32>
    %375 = arith.cmpi sge, %0, %374 : vector<1x16xi32>
    %c8_i32_232 = arith.constant 8 : i32
    %376 = vector.broadcast %c8_i32_232 : i32 to vector<1x16xi32>
    %377 = arith.cmpi slt, %0, %376 : vector<1x16xi32>
    %378 = arith.andi %375, %377 : vector<1x16xi1>
    %cst_233 = arith.constant 0xFF800000 : f32
    %379 = vector.shape_cast %378 : vector<1x16xi1> to vector<1x16xi1>
    %380 = vector.broadcast %379 : vector<1x16xi1> to vector<8x16xi1>
    %381 = vector.broadcast %cst_233 : f32 to vector<8x16xf32>
    %382 = arith.select %380, %362, %381 : vector<8x16xi1>, vector<8x16xf32>
    %cst_234 = arith.constant dense<0xFF800000> : vector<8xf32>
    %383 = vector.multi_reduction <maximumf>, %382, %cst_234 [1] : vector<8x16xf32> to vector<8xf32>
    %384 = vector.shape_cast %383 : vector<8xf32> to vector<8x1xf32>
    %c8_i32_235 = arith.constant 8 : i32
    %385 = vector.broadcast %c8_i32_235 : i32 to vector<1x16xi32>
    %386 = arith.cmpi sge, %0, %385 : vector<1x16xi32>
    %c12_i32_236 = arith.constant 12 : i32
    %387 = vector.broadcast %c12_i32_236 : i32 to vector<1x16xi32>
    %388 = arith.cmpi slt, %0, %387 : vector<1x16xi32>
    %389 = arith.andi %386, %388 : vector<1x16xi1>
    %cst_237 = arith.constant 0xFF800000 : f32
    %390 = vector.shape_cast %389 : vector<1x16xi1> to vector<1x16xi1>
    %391 = vector.broadcast %390 : vector<1x16xi1> to vector<8x16xi1>
    %392 = vector.broadcast %cst_237 : f32 to vector<8x16xf32>
    %393 = arith.select %391, %362, %392 : vector<8x16xi1>, vector<8x16xf32>
    %cst_238 = arith.constant dense<0xFF800000> : vector<8xf32>
    %394 = vector.multi_reduction <maximumf>, %393, %cst_238 [1] : vector<8x16xf32> to vector<8xf32>
    %395 = vector.shape_cast %394 : vector<8xf32> to vector<8x1xf32>
    %c12_i32_239 = arith.constant 12 : i32
    %396 = vector.broadcast %c12_i32_239 : i32 to vector<1x16xi32>
    %397 = arith.cmpi sge, %0, %396 : vector<1x16xi32>
    %c16_i32_240 = arith.constant 16 : i32
    %398 = vector.broadcast %c16_i32_240 : i32 to vector<1x16xi32>
    %399 = arith.cmpi slt, %0, %398 : vector<1x16xi32>
    %400 = arith.andi %397, %399 : vector<1x16xi1>
    %cst_241 = arith.constant 0xFF800000 : f32
    %401 = vector.shape_cast %400 : vector<1x16xi1> to vector<1x16xi1>
    %402 = vector.broadcast %401 : vector<1x16xi1> to vector<8x16xi1>
    %403 = vector.broadcast %cst_241 : f32 to vector<8x16xf32>
    %404 = arith.select %402, %362, %403 : vector<8x16xi1>, vector<8x16xf32>
    %cst_242 = arith.constant dense<0xFF800000> : vector<8xf32>
    %405 = vector.multi_reduction <maximumf>, %404, %cst_242 [1] : vector<8x16xf32> to vector<8xf32>
    %406 = vector.shape_cast %405 : vector<8xf32> to vector<8x1xf32>
    %407 = tpu.concatenate %373, %384, %395, %406 in 1 : vector<8x1xf32>, vector<8x1xf32>, vector<8x1xf32>, vector<8x1xf32> -> vector<8x4xf32>
    %c0_243 = arith.constant 0 : index
    %c18 = arith.constant 18 : index
    %408 = vector.load %arg2[%c0_243, %c18] : memref<8x30xf32, #tpu.memory_space<vmem>>, vector<8x4xf32>
    tpu.vector_store %arg2[%c0_243, %c18], %407 {strides = array<i32>} : memref<8x30xf32, #tpu.memory_space<vmem>>, vector<8x4xf32>,
    %c0_244 = arith.constant 0 : index
    %c8_245 = arith.constant 8 : index
    %c0_246 = arith.constant 0 : index
    %409 = vector.load %arg1[%c0_244, %c8_245, %c0_246] : memref<8x16x16xf32, #tpu.memory_space<vmem>>, vector<8x1x16xf32>
    %410 = vector.shape_cast %409 : vector<8x1x16xf32> to vector<8x16xf32>
    %c0_247 = arith.constant 0 : index
    %c9_248 = arith.constant 9 : index
    %c0_249 = arith.constant 0 : index
    %411 = vector.load %arg1[%c0_247, %c9_248, %c0_249] : memref<8x16x16xf32, #tpu.memory_space<vmem>>, vector<8x1x16xf32>
    %412 = vector.shape_cast %411 : vector<8x1x16xf32> to vector<8x16xf32>
    %413 = arith.maximumf %410, %412 : vector<8x16xf32>
    %c0_250 = arith.constant 0 : index
    %c10_251 = arith.constant 10 : index
    %c0_252 = arith.constant 0 : index
    %414 = vector.load %arg1[%c0_250, %c10_251, %c0_252] : memref<8x16x16xf32, #tpu.memory_space<vmem>>, vector<8x1x16xf32>
    %415 = vector.shape_cast %414 : vector<8x1x16xf32> to vector<8x16xf32>
    %416 = arith.maximumf %413, %415 : vector<8x16xf32>
    %c0_253 = arith.constant 0 : index
    %c11_254 = arith.constant 11 : index
    %c0_255 = arith.constant 0 : index
    %417 = vector.load %arg1[%c0_253, %c11_254, %c0_255] : memref<8x16x16xf32, #tpu.memory_space<vmem>>, vector<8x1x16xf32>
    %418 = vector.shape_cast %417 : vector<8x1x16xf32> to vector<8x16xf32>
    %419 = arith.maximumf %416, %418 : vector<8x16xf32>
    %c0_i32_256 = arith.constant 0 : i32
    %420 = vector.broadcast %c0_i32_256 : i32 to vector<1x16xi32>
    %421 = arith.cmpi sge, %0, %420 : vector<1x16xi32>
    %c4_i32_257 = arith.constant 4 : i32
    %422 = vector.broadcast %c4_i32_257 : i32 to vector<1x16xi32>
    %423 = arith.cmpi slt, %0, %422 : vector<1x16xi32>
    %424 = arith.andi %421, %423 : vector<1x16xi1>
    %cst_258 = arith.constant 0xFF800000 : f32
    %425 = vector.shape_cast %424 : vector<1x16xi1> to vector<1x16xi1>
    %426 = vector.broadcast %425 : vector<1x16xi1> to vector<8x16xi1>
    %427 = vector.broadcast %cst_258 : f32 to vector<8x16xf32>
    %428 = arith.select %426, %419, %427 : vector<8x16xi1>, vector<8x16xf32>
    %cst_259 = arith.constant dense<0xFF800000> : vector<8xf32>
    %429 = vector.multi_reduction <maximumf>, %428, %cst_259 [1] : vector<8x16xf32> to vector<8xf32>
    %430 = vector.shape_cast %429 : vector<8xf32> to vector<8x1xf32>
    %c4_i32_260 = arith.constant 4 : i32
    %431 = vector.broadcast %c4_i32_260 : i32 to vector<1x16xi32>
    %432 = arith.cmpi sge, %0, %431 : vector<1x16xi32>
    %c8_i32_261 = arith.constant 8 : i32
    %433 = vector.broadcast %c8_i32_261 : i32 to vector<1x16xi32>
    %434 = arith.cmpi slt, %0, %433 : vector<1x16xi32>
    %435 = arith.andi %432, %434 : vector<1x16xi1>
    %cst_262 = arith.constant 0xFF800000 : f32
    %436 = vector.shape_cast %435 : vector<1x16xi1> to vector<1x16xi1>
    %437 = vector.broadcast %436 : vector<1x16xi1> to vector<8x16xi1>
    %438 = vector.broadcast %cst_262 : f32 to vector<8x16xf32>
    %439 = arith.select %437, %419, %438 : vector<8x16xi1>, vector<8x16xf32>
    %cst_263 = arith.constant dense<0xFF800000> : vector<8xf32>
    %440 = vector.multi_reduction <maximumf>, %439, %cst_263 [1] : vector<8x16xf32> to vector<8xf32>
    %441 = vector.shape_cast %440 : vector<8xf32> to vector<8x1xf32>
    %c8_i32_264 = arith.constant 8 : i32
    %442 = vector.broadcast %c8_i32_264 : i32 to vector<1x16xi32>
    %443 = arith.cmpi sge, %0, %442 : vector<1x16xi32>
    %c12_i32_265 = arith.constant 12 : i32
    %444 = vector.broadcast %c12_i32_265 : i32 to vector<1x16xi32>
    %445 = arith.cmpi slt, %0, %444 : vector<1x16xi32>
    %446 = arith.andi %443, %445 : vector<1x16xi1>
    %cst_266 = arith.constant 0xFF800000 : f32
    %447 = vector.shape_cast %446 : vector<1x16xi1> to vector<1x16xi1>
    %448 = vector.broadcast %447 : vector<1x16xi1> to vector<8x16xi1>
    %449 = vector.broadcast %cst_266 : f32 to vector<8x16xf32>
    %450 = arith.select %448, %419, %449 : vector<8x16xi1>, vector<8x16xf32>
    %cst_267 = arith.constant dense<0xFF800000> : vector<8xf32>
    %451 = vector.multi_reduction <maximumf>, %450, %cst_267 [1] : vector<8x16xf32> to vector<8xf32>
    %452 = vector.shape_cast %451 : vector<8xf32> to vector<8x1xf32>
    %c12_i32_268 = arith.constant 12 : i32
    %453 = vector.broadcast %c12_i32_268 : i32 to vector<1x16xi32>
    %454 = arith.cmpi sge, %0, %453 : vector<1x16xi32>
    %c16_i32_269 = arith.constant 16 : i32
    %455 = vector.broadcast %c16_i32_269 : i32 to vector<1x16xi32>
    %456 = arith.cmpi slt, %0, %455 : vector<1x16xi32>
    %457 = arith.andi %454, %456 : vector<1x16xi1>
    %cst_270 = arith.constant 0xFF800000 : f32
    %458 = vector.shape_cast %457 : vector<1x16xi1> to vector<1x16xi1>
    %459 = vector.broadcast %458 : vector<1x16xi1> to vector<8x16xi1>
    %460 = vector.broadcast %cst_270 : f32 to vector<8x16xf32>
    %461 = arith.select %459, %419, %460 : vector<8x16xi1>, vector<8x16xf32>
    %cst_271 = arith.constant dense<0xFF800000> : vector<8xf32>
    %462 = vector.multi_reduction <maximumf>, %461, %cst_271 [1] : vector<8x16xf32> to vector<8xf32>
    %463 = vector.shape_cast %462 : vector<8xf32> to vector<8x1xf32>
    %464 = tpu.concatenate %430, %441, %452, %463 in 1 : vector<8x1xf32>, vector<8x1xf32>, vector<8x1xf32>, vector<8x1xf32> -> vector<8x4xf32>
    %c0_272 = arith.constant 0 : index
    %c22 = arith.constant 22 : index
    %465 = vector.load %arg2[%c0_272, %c22] : memref<8x30xf32, #tpu.memory_space<vmem>>, vector<8x4xf32>
    tpu.vector_store %arg2[%c0_272, %c22], %464 {strides = array<i32>} : memref<8x30xf32, #tpu.memory_space<vmem>>, vector<8x4xf32>,
    %c0_273 = arith.constant 0 : index
    %c12_274 = arith.constant 12 : index
    %c0_275 = arith.constant 0 : index
    %466 = vector.load %arg1[%c0_273, %c12_274, %c0_275] : memref<8x16x16xf32, #tpu.memory_space<vmem>>, vector<8x1x16xf32>
    %467 = vector.shape_cast %466 : vector<8x1x16xf32> to vector<8x16xf32>
    %c0_276 = arith.constant 0 : index
    %c13_277 = arith.constant 13 : index
    %c0_278 = arith.constant 0 : index
    %468 = vector.load %arg1[%c0_276, %c13_277, %c0_278] : memref<8x16x16xf32, #tpu.memory_space<vmem>>, vector<8x1x16xf32>
    %469 = vector.shape_cast %468 : vector<8x1x16xf32> to vector<8x16xf32>
    %470 = arith.maximumf %467, %469 : vector<8x16xf32>
    %c0_279 = arith.constant 0 : index
    %c14_280 = arith.constant 14 : index
    %c0_281 = arith.constant 0 : index
    %471 = vector.load %arg1[%c0_279, %c14_280, %c0_281] : memref<8x16x16xf32, #tpu.memory_space<vmem>>, vector<8x1x16xf32>
    %472 = vector.shape_cast %471 : vector<8x1x16xf32> to vector<8x16xf32>
    %473 = arith.maximumf %470, %472 : vector<8x16xf32>
    %c0_282 = arith.constant 0 : index
    %c15_283 = arith.constant 15 : index
    %c0_284 = arith.constant 0 : index
    %474 = vector.load %arg1[%c0_282, %c15_283, %c0_284] : memref<8x16x16xf32, #tpu.memory_space<vmem>>, vector<8x1x16xf32>
    %475 = vector.shape_cast %474 : vector<8x1x16xf32> to vector<8x16xf32>
    %476 = arith.maximumf %473, %475 : vector<8x16xf32>
    %c0_i32_285 = arith.constant 0 : i32
    %477 = vector.broadcast %c0_i32_285 : i32 to vector<1x16xi32>
    %478 = arith.cmpi sge, %0, %477 : vector<1x16xi32>
    %c4_i32_286 = arith.constant 4 : i32
    %479 = vector.broadcast %c4_i32_286 : i32 to vector<1x16xi32>
    %480 = arith.cmpi slt, %0, %479 : vector<1x16xi32>
    %481 = arith.andi %478, %480 : vector<1x16xi1>
    %cst_287 = arith.constant 0xFF800000 : f32
    %482 = vector.shape_cast %481 : vector<1x16xi1> to vector<1x16xi1>
    %483 = vector.broadcast %482 : vector<1x16xi1> to vector<8x16xi1>
    %484 = vector.broadcast %cst_287 : f32 to vector<8x16xf32>
    %485 = arith.select %483, %476, %484 : vector<8x16xi1>, vector<8x16xf32>
    %cst_288 = arith.constant dense<0xFF800000> : vector<8xf32>
    %486 = vector.multi_reduction <maximumf>, %485, %cst_288 [1] : vector<8x16xf32> to vector<8xf32>
    %487 = vector.shape_cast %486 : vector<8xf32> to vector<8x1xf32>
    %c4_i32_289 = arith.constant 4 : i32
    %488 = vector.broadcast %c4_i32_289 : i32 to vector<1x16xi32>
    %489 = arith.cmpi sge, %0, %488 : vector<1x16xi32>
    %c8_i32_290 = arith.constant 8 : i32
    %490 = vector.broadcast %c8_i32_290 : i32 to vector<1x16xi32>
    %491 = arith.cmpi slt, %0, %490 : vector<1x16xi32>
    %492 = arith.andi %489, %491 : vector<1x16xi1>
    %cst_291 = arith.constant 0xFF800000 : f32
    %493 = vector.shape_cast %492 : vector<1x16xi1> to vector<1x16xi1>
    %494 = vector.broadcast %493 : vector<1x16xi1> to vector<8x16xi1>
    %495 = vector.broadcast %cst_291 : f32 to vector<8x16xf32>
    %496 = arith.select %494, %476, %495 : vector<8x16xi1>, vector<8x16xf32>
    %cst_292 = arith.constant dense<0xFF800000> : vector<8xf32>
    %497 = vector.multi_reduction <maximumf>, %496, %cst_292 [1] : vector<8x16xf32> to vector<8xf32>
    %498 = vector.shape_cast %497 : vector<8xf32> to vector<8x1xf32>
    %c8_i32_293 = arith.constant 8 : i32
    %499 = vector.broadcast %c8_i32_293 : i32 to vector<1x16xi32>
    %500 = arith.cmpi sge, %0, %499 : vector<1x16xi32>
    %c12_i32_294 = arith.constant 12 : i32
    %501 = vector.broadcast %c12_i32_294 : i32 to vector<1x16xi32>
    %502 = arith.cmpi slt, %0, %501 : vector<1x16xi32>
    %503 = arith.andi %500, %502 : vector<1x16xi1>
    %cst_295 = arith.constant 0xFF800000 : f32
    %504 = vector.shape_cast %503 : vector<1x16xi1> to vector<1x16xi1>
    %505 = vector.broadcast %504 : vector<1x16xi1> to vector<8x16xi1>
    %506 = vector.broadcast %cst_295 : f32 to vector<8x16xf32>
    %507 = arith.select %505, %476, %506 : vector<8x16xi1>, vector<8x16xf32>
    %cst_296 = arith.constant dense<0xFF800000> : vector<8xf32>
    %508 = vector.multi_reduction <maximumf>, %507, %cst_296 [1] : vector<8x16xf32> to vector<8xf32>
    %509 = vector.shape_cast %508 : vector<8xf32> to vector<8x1xf32>
    %c12_i32_297 = arith.constant 12 : i32
    %510 = vector.broadcast %c12_i32_297 : i32 to vector<1x16xi32>
    %511 = arith.cmpi sge, %0, %510 : vector<1x16xi32>
    %c16_i32_298 = arith.constant 16 : i32
    %512 = vector.broadcast %c16_i32_298 : i32 to vector<1x16xi32>
    %513 = arith.cmpi slt, %0, %512 : vector<1x16xi32>
    %514 = arith.andi %511, %513 : vector<1x16xi1>
    %cst_299 = arith.constant 0xFF800000 : f32
    %515 = vector.shape_cast %514 : vector<1x16xi1> to vector<1x16xi1>
    %516 = vector.broadcast %515 : vector<1x16xi1> to vector<8x16xi1>
    %517 = vector.broadcast %cst_299 : f32 to vector<8x16xf32>
    %518 = arith.select %516, %476, %517 : vector<8x16xi1>, vector<8x16xf32>
    %cst_300 = arith.constant dense<0xFF800000> : vector<8xf32>
    %519 = vector.multi_reduction <maximumf>, %518, %cst_300 [1] : vector<8x16xf32> to vector<8xf32>
    %520 = vector.shape_cast %519 : vector<8xf32> to vector<8x1xf32>
    %521 = tpu.concatenate %487, %498, %509, %520 in 1 : vector<8x1xf32>, vector<8x1xf32>, vector<8x1xf32>, vector<8x1xf32> -> vector<8x4xf32>
    %c0_301 = arith.constant 0 : index
    %c26 = arith.constant 26 : index
    %522 = vector.load %arg2[%c0_301, %c26] : memref<8x30xf32, #tpu.memory_space<vmem>>, vector<8x4xf32>
    tpu.vector_store %arg2[%c0_301, %c26], %521 {strides = array<i32>} : memref<8x30xf32, #tpu.memory_space<vmem>>, vector<8x4xf32>,
    return
  }
  func.func @transform_0(%arg0: i32) -> (i32, i32, i32) {
    %c0_i32 = arith.constant 0 : i32
    %c0_i32_0 = arith.constant 0 : i32
    %c0_i32_1 = arith.constant 0 : i32
    return %arg0, %c0_i32, %c0_i32_0 : i32, i32, i32
  }
  func.func @transform_1(%arg0: i32) -> (i32, i32) {
    %c0_i32 = arith.constant 0 : i32
    %c0_i32_0 = arith.constant 0 : i32
    return %arg0, %c0_i32 : i32, i32
  }
}

</mosaic_0001>

<llo_original>
// kernel: tpu_custom_call.1
$region0: #{tpu_custom_call.1}
  #allocation0 [shape = 'u32[]', space=smem, size = 0x4, offset = 0x4, fixed_abs, tag = 'smem constant byte address 0x4 - core index']
  #allocation1 [shape = 'u32[144,128]{1,0:T(1,128)}', space=vmem, size = 0x12000, scoped, tag = 'internal scratch']
  %s0 = inlined_call_operand.hbm [shape: f32[8,16,16], index: 0, kind: input, shape index: {}]
  %s1 = inlined_call_operand.hbm [shape: f32[8,30], index: 1, kind: output, shape index: {}]
  %s2 = sld [smem:[#allocation0]]
  $region18: #{tpu_custom_call.1} parent=0
    _
  %s4 = ssub.s32 1, %s2
  %s5 = scalar_select 0, %s4, %s2
  $region1: #{tpu_custom_call.1} parent=0
    #allocation2 [shape = 'u8[65536]{0}', space=vmem, size = 0x10000, scoped, tag = 'input window, operand 0, single buffered']
    #allocation3 [shape = 's32[1]{0}', space=sflag, size = 0x4, scoped, tag = 'scoped memory for tpu_custom_call.1']
    #allocation4 [shape = 's32[1]{0}', space=sflag, size = 0x4, scoped, tag = 'scoped memory for tpu_custom_call.1']
    #allocation5 [shape = 'u8[4096]{0}', space=vmem, size = 0x1000, scoped, tag = 'output window, operand 0, single buffered']
    %6 = vsyncpa [#allocation3], 0
    %7 = vsyncpa [#allocation4], 0
    // Predicated region
    $region2: #{tpu_custom_call.1} parent=1 // pred_check
      _
    $region3: #{tpu_custom_call.1} parent=1 // pred_check_branch
      %9 = sbr.rel (0) target = $region5
    $region4: #{tpu_custom_call.1} parent=1 // pred_region
      %s11 = ssub.s32 2048, 2048
      %12 = vsyncadd [#allocation3], %s11
      %s13 = sshll.u32 [#allocation2], 4
      %s14 = int_to_ptr.vmem [resolvable:$true] %s13
      %19 = dma.hbm_to_vmem [thread:$0]  %s0, 2048, %s14, [#allocation3], 128, 128, 8
    $region5: #{tpu_custom_call.1} parent=1 // pred_fallthru
      _
    // Predicated region
    $region6: #{tpu_custom_call.1} parent=1 // pred_check
      _
    $region7: #{tpu_custom_call.1} parent=1 // pred_check_branch
      %21 = sbr.rel (0) target = $region9
    $region8: #{tpu_custom_call.1} parent=1 // pred_region
      %22 = dma.done [#allocation3], 2048
    $region9: #{tpu_custom_call.1} parent=1 // pred_fallthru
      _
    %v23 = vlaneseq
    %v24 = vand.u32 %v23, 127
    %v25 = vld [vmem:[#allocation2] sm:$0x1]
    %v26 = vld [vmem:[#allocation2 + $0x10] sm:$0x1]
    %v27 = vld [vmem:[#allocation2 + $0x20] sm:$0x1]
    %v28 = vld [vmem:[#allocation2 + $0x30] sm:$0x1]
    %v29 = vld [vmem:[#allocation2 + $0x40] sm:$0x1]
    %v30 = vld [vmem:[#allocation2 + $0x50] sm:$0x1]
    %v31 = vld [vmem:[#allocation2 + $0x60] sm:$0x1]
    %v32 = vld [vmem:[#allocation2 + $0x70] sm:$0x1]
    %v33 = vld [vmem:[#allocation2 + $0x1] sm:$0x1]
    %v34 = vld [vmem:[#allocation2 + $0x11] sm:$0x1]
    %v35 = vld [vmem:[#allocation2 + $0x21] sm:$0x1]
    %v36 = vld [vmem:[#allocation2 + $0x31] sm:$0x1]
    %v37 = vld [vmem:[#allocation2 + $0x41] sm:$0x1]
    %v38 = vld [vmem:[#allocation2 + $0x51] sm:$0x1]
    %v39 = vld [vmem:[#allocation2 + $0x61] sm:$0x1]
    %v40 = vld [vmem:[#allocation2 + $0x71] sm:$0x1]
    %v41 = vmax.f32 %v25, %v33
    %v42 = vmax.f32 %v26, %v34
    %v43 = vmax.f32 %v27, %v35
    %v44 = vmax.f32 %v28, %v36
    %v45 = vmax.f32 %v29, %v37
    %v46 = vmax.f32 %v30, %v38
    %v47 = vmax.f32 %v31, %v39
    %v48 = vmax.f32 %v32, %v40
    %v49 = vld [vmem:[#allocation2 + $0x2] sm:$0x1]
    %v50 = vld [vmem:[#allocation2 + $0x12] sm:$0x1]
    %v51 = vld [vmem:[#allocation2 + $0x22] sm:$0x1]
    %v52 = vld [vmem:[#allocation2 + $0x32] sm:$0x1]
    %v53 = vld [vmem:[#allocation2 + $0x42] sm:$0x1]
    %v54 = vld [vmem:[#allocation2 + $0x52] sm:$0x1]
    %v55 = vld [vmem:[#allocation2 + $0x62] sm:$0x1]
    %v56 = vld [vmem:[#allocation2 + $0x72] sm:$0x1]
    %v57 = vmax.f32 %v41, %v49
    %v58 = vmax.f32 %v42, %v50
    %v59 = vmax.f32 %v43, %v51
    %v60 = vmax.f32 %v44, %v52
    %v61 = vmax.f32 %v45, %v53
    %v62 = vmax.f32 %v46, %v54
    %v63 = vmax.f32 %v47, %v55
    %v64 = vmax.f32 %v48, %v56
    %v65 = vld [vmem:[#allocation2 + $0x3] sm:$0x1]
    %v66 = vld [vmem:[#allocation2 + $0x13] sm:$0x1]
    %v67 = vld [vmem:[#allocation2 + $0x23] sm:$0x1]
    %v68 = vld [vmem:[#allocation2 + $0x33] sm:$0x1]
    %v69 = vld [vmem:[#allocation2 + $0x43] sm:$0x1]
    %v70 = vld [vmem:[#allocation2 + $0x53] sm:$0x1]
    %v71 = vld [vmem:[#allocation2 + $0x63] sm:$0x1]
    %v72 = vld [vmem:[#allocation2 + $0x73] sm:$0x1]
    %v73 = vmax.f32 %v57, %v65
    %v74 = vmax.f32 %v58, %v66
    %v75 = vmax.f32 %v59, %v67
    %v76 = vmax.f32 %v60, %v68
    %v77 = vmax.f32 %v61, %v69
    %v78 = vmax.f32 %v62, %v70
    %v79 = vmax.f32 %v63, %v71
    %v80 = vmax.f32 %v64, %v72
    %v81 = vld [vmem:[#allocation2 + $0x4] sm:$0x1]
    %v82 = vld [vmem:[#allocation2 + $0x14] sm:$0x1]
    %v83 = vld [vmem:[#allocation2 + $0x24] sm:$0x1]
    %v84 = vld [vmem:[#allocation2 + $0x34] sm:$0x1]
    %v85 = vld [vmem:[#allocation2 + $0x44] sm:$0x1]
    %v86 = vld [vmem:[#allocation2 + $0x54] sm:$0x1]
    %v87 = vld [vmem:[#allocation2 + $0x64] sm:$0x1]
    %v88 = vld [vmem:[#allocation2 + $0x74] sm:$0x1]
    %v89 = vmax.f32 %v73, %v81
    %v90 = vmax.f32 %v74, %v82
    %v91 = vmax.f32 %v75, %v83
    %v92 = vmax.f32 %v76, %v84
    %v93 = vmax.f32 %v77, %v85
    %v94 = vmax.f32 %v78, %v86
    %v95 = vmax.f32 %v79, %v87
    %v96 = vmax.f32 %v80, %v88
    %v97 = vld [vmem:[#allocation2 + $0x5] sm:$0x1]
    %v98 = vld [vmem:[#allocation2 + $0x15] sm:$0x1]
    %v99 = vld [vmem:[#allocation2 + $0x25] sm:$0x1]
    %v100 = vld [vmem:[#allocation2 + $0x35] sm:$0x1]
    %v101 = vld [vmem:[#allocation2 + $0x45] sm:$0x1]
    %v102 = vld [vmem:[#allocation2 + $0x55] sm:$0x1]
    %v103 = vld [vmem:[#allocation2 + $0x65] sm:$0x1]
    %v104 = vld [vmem:[#allocation2 + $0x75] sm:$0x1]
    %v105 = vmax.f32 %v89, %v97
    %v106 = vmax.f32 %v90, %v98
    %v107 = vmax.f32 %v91, %v99
    %v108 = vmax.f32 %v92, %v100
    %v109 = vmax.f32 %v93, %v101
    %v110 = vmax.f32 %v94, %v102
    %v111 = vmax.f32 %v95, %v103
    %v112 = vmax.f32 %v96, %v104
    %v113 = vld [vmem:[#allocation2 + $0x6] sm:$0x1]
    %v114 = vld [vmem:[#allocation2 + $0x16] sm:$0x1]
    %v115 = vld [vmem:[#allocation2 + $0x26] sm:$0x1]
    %v116 = vld [vmem:[#allocation2 + $0x36] sm:$0x1]
    %v117 = vld [vmem:[#allocation2 + $0x46] sm:$0x1]
    %v118 = vld [vmem:[#allocation2 + $0x56] sm:$0x1]
    %v119 = vld [vmem:[#allocation2 + $0x66] sm:$0x1]
    %v120 = vld [vmem:[#allocation2 + $0x76] sm:$0x1]
    %v121 = vmax.f32 %v105, %v113
    %v122 = vmax.f32 %v106, %v114
    %v123 = vmax.f32 %v107, %v115
    %v124 = vmax.f32 %v108, %v116
    %v125 = vmax.f32 %v109, %v117
    %v126 = vmax.f32 %v110, %v118
    %v127 = vmax.f32 %v111, %v119
    %v128 = vmax.f32 %v112, %v120
    %v129 = vld [vmem:[#allocation2 + $0x7] sm:$0x1]
    %v130 = vld [vmem:[#allocation2 + $0x17] sm:$0x1]
    %v131 = vld [vmem:[#allocation2 + $0x27] sm:$0x1]
    %v132 = vld [vmem:[#allocation2 + $0x37] sm:$0x1]
    %v133 = vld [vmem:[#allocation2 + $0x47] sm:$0x1]
    %v134 = vld [vmem:[#allocation2 + $0x57] sm:$0x1]
    %v135 = vld [vmem:[#allocation2 + $0x67] sm:$0x1]
    %v136 = vld [vmem:[#allocation2 + $0x77] sm:$0x1]
    %v137 = vmax.f32 %v121, %v129
    %v138 = vmax.f32 %v122, %v130
    %v139 = vmax.f32 %v123, %v131
    %v140 = vmax.f32 %v124, %v132
    %v141 = vmax.f32 %v125, %v133
    %v142 = vmax.f32 %v126, %v134
    %v143 = vmax.f32 %v127, %v135
    %v144 = vmax.f32 %v128, %v136
    %v145 = vld [vmem:[#allocation2 + $0x8] sm:$0x1]
    %v146 = vld [vmem:[#allocation2 + $0x18] sm:$0x1]
    %v147 = vld [vmem:[#allocation2 + $0x28] sm:$0x1]
    %v148 = vld [vmem:[#allocation2 + $0x38] sm:$0x1]
    %v149 = vld [vmem:[#allocation2 + $0x48] sm:$0x1]
    %v150 = vld [vmem:[#allocation2 + $0x58] sm:$0x1]
    %v151 = vld [vmem:[#allocation2 + $0x68] sm:$0x1]
    %v152 = vld [vmem:[#allocation2 + $0x78] sm:$0x1]
    %v153 = vmax.f32 %v137, %v145
    %v154 = vmax.f32 %v138, %v146
    %v155 = vmax.f32 %v139, %v147
    %v156 = vmax.f32 %v140, %v148
    %v157 = vmax.f32 %v141, %v149
    %v158 = vmax.f32 %v142, %v150
    %v159 = vmax.f32 %v143, %v151
    %v160 = vmax.f32 %v144, %v152
    %v161 = vld [vmem:[#allocation2 + $0x9] sm:$0x1]
    %v162 = vld [vmem:[#allocation2 + $0x19] sm:$0x1]
    %v163 = vld [vmem:[#allocation2 + $0x29] sm:$0x1]
    %v164 = vld [vmem:[#allocation2 + $0x39] sm:$0x1]
    %v165 = vld [vmem:[#allocation2 + $0x49] sm:$0x1]
    %v166 = vld [vmem:[#allocation2 + $0x59] sm:$0x1]
    %v167 = vld [vmem:[#allocation2 + $0x69] sm:$0x1]
    %v168 = vld [vmem:[#allocation2 + $0x79] sm:$0x1]
    %v169 = vmax.f32 %v153, %v161
    %v170 = vmax.f32 %v154, %v162
    %v171 = vmax.f32 %v155, %v163
    %v172 = vmax.f32 %v156, %v164
    %v173 = vmax.f32 %v157, %v165
    %v174 = vmax.f32 %v158, %v166
    %v175 = vmax.f32 %v159, %v167
    %v176 = vmax.f32 %v160, %v168
    %v177 = vld [vmem:[#allocation2 + $0xa] sm:$0x1]
    %v178 = vld [vmem:[#allocation2 + $0x1a] sm:$0x1]
    %v179 = vld [vmem:[#allocation2 + $0x2a] sm:$0x1]
    %v180 = vld [vmem:[#allocation2 + $0x3a] sm:$0x1]
    %v181 = vld [vmem:[#allocation2 + $0x4a] sm:$0x1]
    %v182 = vld [vmem:[#allocation2 + $0x5a] sm:$0x1]
    %v183 = vld [vmem:[#allocation2 + $0x6a] sm:$0x1]
    %v184 = vld [vmem:[#allocation2 + $0x7a] sm:$0x1]
    %v185 = vmax.f32 %v169, %v177
    %v186 = vmax.f32 %v170, %v178
    %v187 = vmax.f32 %v171, %v179
    %v188 = vmax.f32 %v172, %v180
    %v189 = vmax.f32 %v173, %v181
    %v190 = vmax.f32 %v174, %v182
    %v191 = vmax.f32 %v175, %v183
    %v192 = vmax.f32 %v176, %v184
    %v193 = vld [vmem:[#allocation2 + $0xb] sm:$0x1]
    %v194 = vld [vmem:[#allocation2 + $0x1b] sm:$0x1]
    %v195 = vld [vmem:[#allocation2 + $0x2b] sm:$0x1]
    %v196 = vld [vmem:[#allocation2 + $0x3b] sm:$0x1]
    %v197 = vld [vmem:[#allocation2 + $0x4b] sm:$0x1]
    %v198 = vld [vmem:[#allocation2 + $0x5b] sm:$0x1]
    %v199 = vld [vmem:[#allocation2 + $0x6b] sm:$0x1]
    %v200 = vld [vmem:[#allocation2 + $0x7b] sm:$0x1]
    %v201 = vmax.f32 %v185, %v193
    %v202 = vmax.f32 %v186, %v194
    %v203 = vmax.f32 %v187, %v195
    %v204 = vmax.f32 %v188, %v196
    %v205 = vmax.f32 %v189, %v197
    %v206 = vmax.f32 %v190, %v198
    %v207 = vmax.f32 %v191, %v199
    %v208 = vmax.f32 %v192, %v200
    %v209 = vld [vmem:[#allocation2 + $0xc] sm:$0x1]
    %v210 = vld [vmem:[#allocation2 + $0x1c] sm:$0x1]
    %v211 = vld [vmem:[#allocation2 + $0x2c] sm:$0x1]
    %v212 = vld [vmem:[#allocation2 + $0x3c] sm:$0x1]
    %v213 = vld [vmem:[#allocation2 + $0x4c] sm:$0x1]
    %v214 = vld [vmem:[#allocation2 + $0x5c] sm:$0x1]
    %v215 = vld [vmem:[#allocation2 + $0x6c] sm:$0x1]
    %v216 = vld [vmem:[#allocation2 + $0x7c] sm:$0x1]
    %v217 = vmax.f32 %v201, %v209
    %v218 = vmax.f32 %v202, %v210
    %v219 = vmax.f32 %v203, %v211
    %v220 = vmax.f32 %v204, %v212
    %v221 = vmax.f32 %v205, %v213
    %v222 = vmax.f32 %v206, %v214
    %v223 = vmax.f32 %v207, %v215
    %v224 = vmax.f32 %v208, %v216
    %v225 = vld [vmem:[#allocation2 + $0xd] sm:$0x1]
    %v226 = vld [vmem:[#allocation2 + $0x1d] sm:$0x1]
    %v227 = vld [vmem:[#allocation2 + $0x2d] sm:$0x1]
    %v228 = vld [vmem:[#allocation2 + $0x3d] sm:$0x1]
    %v229 = vld [vmem:[#allocation2 + $0x4d] sm:$0x1]
    %v230 = vld [vmem:[#allocation2 + $0x5d] sm:$0x1]
    %v231 = vld [vmem:[#allocation2 + $0x6d] sm:$0x1]
    %v232 = vld [vmem:[#allocation2 + $0x7d] sm:$0x1]
    %v233 = vmax.f32 %v217, %v225
    %v234 = vmax.f32 %v218, %v226
    %v235 = vmax.f32 %v219, %v227
    %v236 = vmax.f32 %v220, %v228
    %v237 = vmax.f32 %v221, %v229
    %v238 = vmax.f32 %v222, %v230
    %v239 = vmax.f32 %v223, %v231
    %v240 = vmax.f32 %v224, %v232
    %v241 = vld [vmem:[#allocation2 + $0xe] sm:$0x1]
    %v242 = vld [vmem:[#allocation2 + $0x1e] sm:$0x1]
    %v243 = vld [vmem:[#allocation2 + $0x2e] sm:$0x1]
    %v244 = vld [vmem:[#allocation2 + $0x3e] sm:$0x1]
    %v245 = vld [vmem:[#allocation2 + $0x4e] sm:$0x1]
    %v246 = vld [vmem:[#allocation2 + $0x5e] sm:$0x1]
    %v247 = vld [vmem:[#allocation2 + $0x6e] sm:$0x1]
    %v248 = vld [vmem:[#allocation2 + $0x7e] sm:$0x1]
    %v249 = vmax.f32 %v233, %v241
    %v250 = vmax.f32 %v234, %v242
    %v251 = vmax.f32 %v235, %v243
    %v252 = vmax.f32 %v236, %v244
    %v253 = vmax.f32 %v237, %v245
    %v254 = vmax.f32 %v238, %v246
    %v255 = vmax.f32 %v239, %v247
    %v256 = vmax.f32 %v240, %v248
    %v257 = vld [vmem:[#allocation2 + $0xf] sm:$0x1]
    %v258 = vld [vmem:[#allocation2 + $0x1f] sm:$0x1]
    %v259 = vld [vmem:[#allocation2 + $0x2f] sm:$0x1]
    %v260 = vld [vmem:[#allocation2 + $0x3f] sm:$0x1]
    %v261 = vld [vmem:[#allocation2 + $0x4f] sm:$0x1]
    %v262 = vld [vmem:[#allocation2 + $0x5f] sm:$0x1]
    %v263 = vld [vmem:[#allocation2 + $0x6f] sm:$0x1]
    %v264 = vld [vmem:[#allocation2 + $0x7f] sm:$0x1]
    %v265 = vmax.f32 %v249, %v257
    %v266 = vmax.f32 %v250, %v258
    %v267 = vmax.f32 %v251, %v259
    %v268 = vmax.f32 %v252, %v260
    %v269 = vmax.f32 %v253, %v261
    %v270 = vmax.f32 %v254, %v262
    %v271 = vmax.f32 %v255, %v263
    %v272 = vmax.f32 %v256, %v264
    %v281 = vrot.slane %v266, 7
    %vm282 = vcmask 1041409
    %v283 = vsel %vm282, %v281, %v265
    %v284 = vrot.slane %v267, 6
    %vm285 = vcmask 1042434
    %v286 = vsel %vm285, %v284, %v283
    %v287 = vrot.slane %v268, 5
    %vm288 = vcmask 1043459
    %v289 = vsel %vm288, %v287, %v286
    %v290 = vrot.slane %v269, 4
    %vm291 = vcmask 1044484
    %v292 = vsel %vm291, %v290, %v289
    %v293 = vrot.slane %v270, 3
    %vm294 = vcmask 1045509
    %v295 = vsel %vm294, %v293, %v292
    %v296 = vrot.slane %v271, 2
    %vm297 = vcmask 1046534
    %v298 = vsel %vm297, %v296, %v295
    %v299 = vrot.slane %v272, 1
    %vm300 = vcmask 1047559
    %v301 = vsel %vm300, %v299, %v298
    %vm303 = vcmask 130048
    %v304 = vsel %vm303, %v301, -inf
    %305 = vmax.xlane.f32.xlu0 %v304
    %v306 = vpop.xlane.xlu0 %305
    %vm307 = vcmask 7168
    %308 = vst.msk [vmem:[#allocation5] sm:$0xff] %vm307, %v306
    %v309 = vld [vmem:[#allocation2] sm:$0x1]
    %v310 = vld [vmem:[#allocation2 + $0x10] sm:$0x1]
    %v311 = vld [vmem:[#allocation2 + $0x20] sm:$0x1]
    %v312 = vld [vmem:[#allocation2 + $0x30] sm:$0x1]
    %v313 = vld [vmem:[#allocation2 + $0x40] sm:$0x1]
    %v314 = vld [vmem:[#allocation2 + $0x50] sm:$0x1]
    %v315 = vld [vmem:[#allocation2 + $0x60] sm:$0x1]
    %v316 = vld [vmem:[#allocation2 + $0x70] sm:$0x1]
    %v317 = vld [vmem:[#allocation2 + $0x1] sm:$0x1]
    %v318 = vld [vmem:[#allocation2 + $0x11] sm:$0x1]
    %v319 = vld [vmem:[#allocation2 + $0x21] sm:$0x1]
    %v320 = vld [vmem:[#allocation2 + $0x31] sm:$0x1]
    %v321 = vld [vmem:[#allocation2 + $0x41] sm:$0x1]
    %v322 = vld [vmem:[#allocation2 + $0x51] sm:$0x1]
    %v323 = vld [vmem:[#allocation2 + $0x61] sm:$0x1]
    %v324 = vld [vmem:[#allocation2 + $0x71] sm:$0x1]
    %v325 = vmax.f32 %v309, %v317
    %v326 = vmax.f32 %v310, %v318
    %v327 = vmax.f32 %v311, %v319
    %v328 = vmax.f32 %v312, %v320
    %v329 = vmax.f32 %v313, %v321
    %v330 = vmax.f32 %v314, %v322
    %v331 = vmax.f32 %v315, %v323
    %v332 = vmax.f32 %v316, %v324
    %v333 = vld [vmem:[#allocation2 + $0x2] sm:$0x1]
    %v334 = vld [vmem:[#allocation2 + $0x12] sm:$0x1]
    %v335 = vld [vmem:[#allocation2 + $0x22] sm:$0x1]
    %v336 = vld [vmem:[#allocation2 + $0x32] sm:$0x1]
    %v337 = vld [vmem:[#allocation2 + $0x42] sm:$0x1]
    %v338 = vld [vmem:[#allocation2 + $0x52] sm:$0x1]
    %v339 = vld [vmem:[#allocation2 + $0x62] sm:$0x1]
    %v340 = vld [vmem:[#allocation2 + $0x72] sm:$0x1]
    %v341 = vmax.f32 %v325, %v333
    %v342 = vmax.f32 %v326, %v334
    %v343 = vmax.f32 %v327, %v335
    %v344 = vmax.f32 %v328, %v336
    %v345 = vmax.f32 %v329, %v337
    %v346 = vmax.f32 %v330, %v338
    %v347 = vmax.f32 %v331, %v339
    %v348 = vmax.f32 %v332, %v340
    %v349 = vld [vmem:[#allocation2 + $0x3] sm:$0x1]
    %v350 = vld [vmem:[#allocation2 + $0x13] sm:$0x1]
    %v351 = vld [vmem:[#allocation2 + $0x23] sm:$0x1]
    %v352 = vld [vmem:[#allocation2 + $0x33] sm:$0x1]
    %v353 = vld [vmem:[#allocation2 + $0x43] sm:$0x1]
    %v354 = vld [vmem:[#allocation2 + $0x53] sm:$0x1]
    %v355 = vld [vmem:[#allocation2 + $0x63] sm:$0x1]
    %v356 = vld [vmem:[#allocation2 + $0x73] sm:$0x1]
    %v357 = vmax.f32 %v341, %v349
    %v358 = vmax.f32 %v342, %v350
    %v359 = vmax.f32 %v343, %v351
    %v360 = vmax.f32 %v344, %v352
    %v361 = vmax.f32 %v345, %v353
    %v362 = vmax.f32 %v346, %v354
    %v363 = vmax.f32 %v347, %v355
    %v364 = vmax.f32 %v348, %v356
    %v365 = vld [vmem:[#allocation2 + $0x4] sm:$0x1]
    %v366 = vld [vmem:[#allocation2 + $0x14] sm:$0x1]
    %v367 = vld [vmem:[#allocation2 + $0x24] sm:$0x1]
    %v368 = vld [vmem:[#allocation2 + $0x34] sm:$0x1]
    %v369 = vld [vmem:[#allocation2 + $0x44] sm:$0x1]
    %v370 = vld [vmem:[#allocation2 + $0x54] sm:$0x1]
    %v371 = vld [vmem:[#allocation2 + $0x64] sm:$0x1]
    %v372 = vld [vmem:[#allocation2 + $0x74] sm:$0x1]
    %v373 = vmax.f32 %v357, %v365
    %v374 = vmax.f32 %v358, %v366
    %v375 = vmax.f32 %v359, %v367
    %v376 = vmax.f32 %v360, %v368
    %v377 = vmax.f32 %v361, %v369
    %v378 = vmax.f32 %v362, %v370
    %v379 = vmax.f32 %v363, %v371
    %v380 = vmax.f32 %v364, %v372
    %v381 = vld [vmem:[#allocation2 + $0x5] sm:$0x1]
    %v382 = vld [vmem:[#allocation2 + $0x15] sm:$0x1]
    %v383 = vld [vmem:[#allocation2 + $0x25] sm:$0x1]
    %v384 = vld [vmem:[#allocation2 + $0x35] sm:$0x1]
    %v385 = vld [vmem:[#allocation2 + $0x45] sm:$0x1]
    %v386 = vld [vmem:[#allocation2 + $0x55] sm:$0x1]
    %v387 = vld [vmem:[#allocation2 + $0x65] sm:$0x1]
    %v388 = vld [vmem:[#allocation2 + $0x75] sm:$0x1]
    %v389 = vmax.f32 %v373, %v381
    %v390 = vmax.f32 %v374, %v382
    %v391 = vmax.f32 %v375, %v383
    %v392 = vmax.f32 %v376, %v384
    %v393 = vmax.f32 %v377, %v385
    %v394 = vmax.f32 %v378, %v386
    %v395 = vmax.f32 %v379, %v387
    %v396 = vmax.f32 %v380, %v388
    %v397 = vld [vmem:[#allocation2 + $0x6] sm:$0x1]
    %v398 = vld [vmem:[#allocation2 + $0x16] sm:$0x1]
    %v399 = vld [vmem:[#allocation2 + $0x26] sm:$0x1]
    %v400 = vld [vmem:[#allocation2 + $0x36] sm:$0x1]
    %v401 = vld [vmem:[#allocation2 + $0x46] sm:$0x1]
    %v402 = vld [vmem:[#allocation2 + $0x56] sm:$0x1]
    %v403 = vld [vmem:[#allocation2 + $0x66] sm:$0x1]
    %v404 = vld [vmem:[#allocation2 + $0x76] sm:$0x1]
    %v405 = vmax.f32 %v389, %v397
    %v406 = vmax.f32 %v390, %v398
    %v407 = vmax.f32 %v391, %v399
    %v408 = vmax.f32 %v392, %v400
    %v409 = vmax.f32 %v393, %v401
    %v410 = vmax.f32 %v394, %v402
    %v411 = vmax.f32 %v395, %v403
    %v412 = vmax.f32 %v396, %v404
    %v413 = vld [vmem:[#allocation2 + $0x7] sm:$0x1]
    %v414 = vld [vmem:[#allocation2 + $0x17] sm:$0x1]
    %v415 = vld [vmem:[#allocation2 + $0x27] sm:$0x1]
    %v416 = vld [vmem:[#allocation2 + $0x37] sm:$0x1]
    %v417 = vld [vmem:[#allocation2 + $0x47] sm:$0x1]
    %v418 = vld [vmem:[#allocation2 + $0x57] sm:$0x1]
    %v419 = vld [vmem:[#allocation2 + $0x67] sm:$0x1]
    %v420 = vld [vmem:[#allocation2 + $0x77] sm:$0x1]
    %v421 = vmax.f32 %v405, %v413
    %v422 = vmax.f32 %v406, %v414
    %v423 = vmax.f32 %v407, %v415
    %v424 = vmax.f32 %v408, %v416
    %v425 = vmax.f32 %v409, %v417
    %v426 = vmax.f32 %v410, %v418
    %v427 = vmax.f32 %v411, %v419
    %v428 = vmax.f32 %v412, %v420
    %vm429 = vcmp.ge.s32.totalorder %v24, 0
    %vm430 = vcmp.lt.s32.totalorder %v24, 8
    %vm431 = vmand %vm429, %vm430
    %v432 = vsel %vm431, 1, 0
    %vm433 = vcmp.eq.s32.totalorder %v432, 1
    %v442 = vrot.slane %v422, 7
    %v443 = vsel %vm282, %v442, %v421
    %v444 = vrot.slane %v423, 6
    %v445 = vsel %vm285, %v444, %v443
    %v446 = vrot.slane %v424, 5
    %v447 = vsel %vm288, %v446, %v445
    %v448 = vrot.slane %v425, 4
    %v449 = vsel %vm291, %v448, %v447
    %v450 = vrot.slane %v426, 3
    %v451 = vsel %vm294, %v450, %v449
    %v452 = vrot.slane %v427, 2
    %v453 = vsel %vm297, %v452, %v451
    %v454 = vrot.slane %v428, 1
    %v455 = vsel %vm300, %v454, %v453
    %v457 = vsel %vm433, %v455, -inf
    %v458 = vsel %vm303, %v457, -inf
    %459 = vmax.xlane.f32.xlu0 %v458
    %v460 = vpop.xlane.xlu0 %459
    %vm461 = vcmp.ge.s32.totalorder %v24, 8
    %vm462 = vcmp.lt.s32.totalorder %v24, 16
    %vm463 = vmand %vm461, %vm462
    %v464 = vsel %vm463, 1, 0
    %vm465 = vcmp.eq.s32.totalorder %v464, 1
    %v466 = vsel %vm465, %v455, -inf
    %v467 = vsel %vm303, %v466, -inf
    %468 = vmax.xlane.f32.xlu0 %v467
    %v469 = vpop.xlane.xlu0 %468
    %v470 = vsel %vm307, %v460, %v469
    %472 = vrot.lane.b32.xlu0 %v470, 1
    %v473 = vpop.permute.xlu0 %472
    %vm475 = vcmask 23560
    %476 = vst.msk [vmem:[#allocation5] sm:$0xff] %vm475, %v473
    %v477 = vld [vmem:[#allocation2 + $0x8] sm:$0x1]
    %v478 = vld [vmem:[#allocation2 + $0x18] sm:$0x1]
    %v479 = vld [vmem:[#allocation2 + $0x28] sm:$0x1]
    %v480 = vld [vmem:[#allocation2 + $0x38] sm:$0x1]
    %v481 = vld [vmem:[#allocation2 + $0x48] sm:$0x1]
    %v482 = vld [vmem:[#allocation2 + $0x58] sm:$0x1]
    %v483 = vld [vmem:[#allocation2 + $0x68] sm:$0x1]
    %v484 = vld [vmem:[#allocation2 + $0x78] sm:$0x1]
    %v485 = vld [vmem:[#allocation2 + $0x9] sm:$0x1]
    %v486 = vld [vmem:[#allocation2 + $0x19] sm:$0x1]
    %v487 = vld [vmem:[#allocation2 + $0x29] sm:$0x1]
    %v488 = vld [vmem:[#allocation2 + $0x39] sm:$0x1]
    %v489 = vld [vmem:[#allocation2 + $0x49] sm:$0x1]
    %v490 = vld [vmem:[#allocation2 + $0x59] sm:$0x1]
    %v491 = vld [vmem:[#allocation2 + $0x69] sm:$0x1]
    %v492 = vld [vmem:[#allocation2 + $0x79] sm:$0x1]
    %v493 = vmax.f32 %v477, %v485
    %v494 = vmax.f32 %v478, %v486
    %v495 = vmax.f32 %v479, %v487
    %v496 = vmax.f32 %v480, %v488
    %v497 = vmax.f32 %v481, %v489
    %v498 = vmax.f32 %v482, %v490
    %v499 = vmax.f32 %v483, %v491
    %v500 = vmax.f32 %v484, %v492
    %v501 = vld [vmem:[#allocation2 + $0xa] sm:$0x1]
    %v502 = vld [vmem:[#allocation2 + $0x1a] sm:$0x1]
    %v503 = vld [vmem:[#allocation2 + $0x2a] sm:$0x1]
    %v504 = vld [vmem:[#allocation2 + $0x3a] sm:$0x1]
    %v505 = vld [vmem:[#allocation2 + $0x4a] sm:$0x1]
    %v506 = vld [vmem:[#allocation2 + $0x5a] sm:$0x1]
    %v507 = vld [vmem:[#allocation2 + $0x6a] sm:$0x1]
    %v508 = vld [vmem:[#allocation2 + $0x7a] sm:$0x1]
    %v509 = vmax.f32 %v493, %v501
    %v510 = vmax.f32 %v494, %v502
    %v511 = vmax.f32 %v495, %v503
    %v512 = vmax.f32 %v496, %v504
    %v513 = vmax.f32 %v497, %v505
    %v514 = vmax.f32 %v498, %v506
    %v515 = vmax.f32 %v499, %v507
    %v516 = vmax.f32 %v500, %v508
    %v517 = vld [vmem:[#allocation2 + $0xb] sm:$0x1]
    %v518 = vld [vmem:[#allocation2 + $0x1b] sm:$0x1]
    %v519 = vld [vmem:[#allocation2 + $0x2b] sm:$0x1]
    %v520 = vld [vmem:[#allocation2 + $0x3b] sm:$0x1]
    %v521 = vld [vmem:[#allocation2 + $0x4b] sm:$0x1]
    %v522 = vld [vmem:[#allocation2 + $0x5b] sm:$0x1]
    %v523 = vld [vmem:[#allocation2 + $0x6b] sm:$0x1]
    %v524 = vld [vmem:[#allocation2 + $0x7b] sm:$0x1]
    %v525 = vmax.f32 %v509, %v517
    %v526 = vmax.f32 %v510, %v518
    %v527 = vmax.f32 %v511, %v519
    %v528 = vmax.f32 %v512, %v520
    %v529 = vmax.f32 %v513, %v521
    %v530 = vmax.f32 %v514, %v522
    %v531 = vmax.f32 %v515, %v523
    %v532 = vmax.f32 %v516, %v524
    %v533 = vld [vmem:[#allocation2 + $0xc] sm:$0x1]
    %v534 = vld [vmem:[#allocation2 + $0x1c] sm:$0x1]
    %v535 = vld [vmem:[#allocation2 + $0x2c] sm:$0x1]
    %v536 = vld [vmem:[#allocation2 + $0x3c] sm:$0x1]
    %v537 = vld [vmem:[#allocation2 + $0x4c] sm:$0x1]
    %v538 = vld [vmem:[#allocation2 + $0x5c] sm:$0x1]
    %v539 = vld [vmem:[#allocation2 + $0x6c] sm:$0x1]
    %v540 = vld [vmem:[#allocation2 + $0x7c] sm:$0x1]
    %v541 = vmax.f32 %v525, %v533
    %v542 = vmax.f32 %v526, %v534
    %v543 = vmax.f32 %v527, %v535
    %v544 = vmax.f32 %v528, %v536
    %v545 = vmax.f32 %v529, %v537
    %v546 = vmax.f32 %v530, %v538
    %v547 = vmax.f32 %v531, %v539
    %v548 = vmax.f32 %v532, %v540
    %v549 = vld [vmem:[#allocation2 + $0xd] sm:$0x1]
    %v550 = vld [vmem:[#allocation2 + $0x1d] sm:$0x1]
    %v551 = vld [vmem:[#allocation2 + $0x2d] sm:$0x1]
    %v552 = vld [vmem:[#allocation2 + $0x3d] sm:$0x1]
    %v553 = vld [vmem:[#allocation2 + $0x4d] sm:$0x1]
    %v554 = vld [vmem:[#allocation2 + $0x5d] sm:$0x1]
    %v555 = vld [vmem:[#allocation2 + $0x6d] sm:$0x1]
    %v556 = vld [vmem:[#allocation2 + $0x7d] sm:$0x1]
    %v557 = vmax.f32 %v541, %v549
    %v558 = vmax.f32 %v542, %v550
    %v559 = vmax.f32 %v543, %v551
    %v560 = vmax.f32 %v544, %v552
    %v561 = vmax.f32 %v545, %v553
    %v562 = vmax.f32 %v546, %v554
    %v563 = vmax.f32 %v547, %v555
    %v564 = vmax.f32 %v548, %v556
    %v565 = vld [vmem:[#allocation2 + $0xe] sm:$0x1]
    %v566 = vld [vmem:[#allocation2 + $0x1e] sm:$0x1]
    %v567 = vld [vmem:[#allocation2 + $0x2e] sm:$0x1]
    %v568 = vld [vmem:[#allocation2 + $0x3e] sm:$0x1]
    %v569 = vld [vmem:[#allocation2 + $0x4e] sm:$0x1]
    %v570 = vld [vmem:[#allocation2 + $0x5e] sm:$0x1]
    %v571 = vld [vmem:[#allocation2 + $0x6e] sm:$0x1]
    %v572 = vld [vmem:[#allocation2 + $0x7e] sm:$0x1]
    %v573 = vmax.f32 %v557, %v565
    %v574 = vmax.f32 %v558, %v566
    %v575 = vmax.f32 %v559, %v567
    %v576 = vmax.f32 %v560, %v568
    %v577 = vmax.f32 %v561, %v569
    %v578 = vmax.f32 %v562, %v570
    %v579 = vmax.f32 %v563, %v571
    %v580 = vmax.f32 %v564, %v572
    %v581 = vld [vmem:[#allocation2 + $0xf] sm:$0x1]
    %v582 = vld [vmem:[#allocation2 + $0x1f] sm:$0x1]
    %v583 = vld [vmem:[#allocation2 + $0x2f] sm:$0x1]
    %v584 = vld [vmem:[#allocation2 + $0x3f] sm:$0x1]
    %v585 = vld [vmem:[#allocation2 + $0x4f] sm:$0x1]
    %v586 = vld [vmem:[#allocation2 + $0x5f] sm:$0x1]
    %v587 = vld [vmem:[#allocation2 + $0x6f] sm:$0x1]
    %v588 = vld [vmem:[#allocation2 + $0x7f] sm:$0x1]
    %v589 = vmax.f32 %v573, %v581
    %v590 = vmax.f32 %v574, %v582
    %v591 = vmax.f32 %v575, %v583
    %v592 = vmax.f32 %v576, %v584
    %v593 = vmax.f32 %v577, %v585
    %v594 = vmax.f32 %v578, %v586
    %v595 = vmax.f32 %v579, %v587
    %v596 = vmax.f32 %v580, %v588
    %v605 = vrot.slane %v590, 7
    %v606 = vsel %vm282, %v605, %v589
    %v607 = vrot.slane %v591, 6
    %v608 = vsel %vm285, %v607, %v606
    %v609 = vrot.slane %v592, 5
    %v610 = vsel %vm288, %v609, %v608
    %v611 = vrot.slane %v593, 4
    %v612 = vsel %vm291, %v611, %v610
    %v613 = vrot.slane %v594, 3
    %v614 = vsel %vm294, %v613, %v612
    %v615 = vrot.slane %v595, 2
    %v616 = vsel %vm297, %v615, %v614
    %v617 = vrot.slane %v596, 1
    %v618 = vsel %vm300, %v617, %v616
    %v620 = vsel %vm433, %v618, -inf
    %v621 = vsel %vm303, %v620, -inf
    %622 = vmax.xlane.f32.xlu0 %v621
    %v623 = vpop.xlane.xlu0 %622
    %v624 = vsel %vm465, %v618, -inf
    %v625 = vsel %vm303, %v624, -inf
    %626 = vmax.xlane.f32.xlu0 %v625
    %v627 = vpop.xlane.xlu0 %626
    %v628 = vsel %vm307, %v623, %v627
    %630 = vrot.lane.b32.xlu0 %v628, 3
    %v631 = vpop.permute.xlu0 %630
    %vm633 = vcmask 39960
    %634 = vst.msk [vmem:[#allocation5] sm:$0xff] %vm633, %v631
    %v635 = vld [vmem:[#allocation2] sm:$0x1]
    %v636 = vld [vmem:[#allocation2 + $0x10] sm:$0x1]
    %v637 = vld [vmem:[#allocation2 + $0x20] sm:$0x1]
    %v638 = vld [vmem:[#allocation2 + $0x30] sm:$0x1]
    %v639 = vld [vmem:[#allocation2 + $0x40] sm:$0x1]
    %v640 = vld [vmem:[#allocation2 + $0x50] sm:$0x1]
    %v641 = vld [vmem:[#allocation2 + $0x60] sm:$0x1]
    %v642 = vld [vmem:[#allocation2 + $0x70] sm:$0x1]
    %v643 = vld [vmem:[#allocation2 + $0x1] sm:$0x1]
    %v644 = vld [vmem:[#allocation2 + $0x11] sm:$0x1]
    %v645 = vld [vmem:[#allocation2 + $0x21] sm:$0x1]
    %v646 = vld [vmem:[#allocation2 + $0x31] sm:$0x1]
    %v647 = vld [vmem:[#allocation2 + $0x41] sm:$0x1]
    %v648 = vld [vmem:[#allocation2 + $0x51] sm:$0x1]
    %v649 = vld [vmem:[#allocation2 + $0x61] sm:$0x1]
    %v650 = vld [vmem:[#allocation2 + $0x71] sm:$0x1]
    %v651 = vmax.f32 %v635, %v643
    %v652 = vmax.f32 %v636, %v644
    %v653 = vmax.f32 %v637, %v645
    %v654 = vmax.f32 %v638, %v646
    %v655 = vmax.f32 %v639, %v647
    %v656 = vmax.f32 %v640, %v648
    %v657 = vmax.f32 %v641, %v649
    %v658 = vmax.f32 %v642, %v650
    %v659 = vld [vmem:[#allocation2 + $0x2] sm:$0x1]
    %v660 = vld [vmem:[#allocation2 + $0x12] sm:$0x1]
    %v661 = vld [vmem:[#allocation2 + $0x22] sm:$0x1]
    %v662 = vld [vmem:[#allocation2 + $0x32] sm:$0x1]
    %v663 = vld [vmem:[#allocation2 + $0x42] sm:$0x1]
    %v664 = vld [vmem:[#allocation2 + $0x52] sm:$0x1]
    %v665 = vld [vmem:[#allocation2 + $0x62] sm:$0x1]
    %v666 = vld [vmem:[#allocation2 + $0x72] sm:$0x1]
    %v667 = vmax.f32 %v651, %v659
    %v668 = vmax.f32 %v652, %v660
    %v669 = vmax.f32 %v653, %v661
    %v670 = vmax.f32 %v654, %v662
    %v671 = vmax.f32 %v655, %v663
    %v672 = vmax.f32 %v656, %v664
    %v673 = vmax.f32 %v657, %v665
    %v674 = vmax.f32 %v658, %v666
    %v675 = vld [vmem:[#allocation2 + $0x3] sm:$0x1]
    %v676 = vld [vmem:[#allocation2 + $0x13] sm:$0x1]
    %v677 = vld [vmem:[#allocation2 + $0x23] sm:$0x1]
    %v678 = vld [vmem:[#allocation2 + $0x33] sm:$0x1]
    %v679 = vld [vmem:[#allocation2 + $0x43] sm:$0x1]
    %v680 = vld [vmem:[#allocation2 + $0x53] sm:$0x1]
    %v681 = vld [vmem:[#allocation2 + $0x63] sm:$0x1]
    %v682 = vld [vmem:[#allocation2 + $0x73] sm:$0x1]
    %v683 = vmax.f32 %v667, %v675
    %v684 = vmax.f32 %v668, %v676
    %v685 = vmax.f32 %v669, %v677
    %v686 = vmax.f32 %v670, %v678
    %v687 = vmax.f32 %v671, %v679
    %v688 = vmax.f32 %v672, %v680
    %v689 = vmax.f32 %v673, %v681
    %v690 = vmax.f32 %v674, %v682
    %v691 = vld [vmem:[#allocation2 + $0x4] sm:$0x1]
    %v692 = vld [vmem:[#allocation2 + $0x14] sm:$0x1]
    %v693 = vld [vmem:[#allocation2 + $0x24] sm:$0x1]
    %v694 = vld [vmem:[#allocation2 + $0x34] sm:$0x1]
    %v695 = vld [vmem:[#allocation2 + $0x44] sm:$0x1]
    %v696 = vld [vmem:[#allocation2 + $0x54] sm:$0x1]
    %v697 = vld [vmem:[#allocation2 + $0x64] sm:$0x1]
    %v698 = vld [vmem:[#allocation2 + $0x74] sm:$0x1]
    %v699 = vmax.f32 %v683, %v691
    %v700 = vmax.f32 %v684, %v692
    %v701 = vmax.f32 %v685, %v693
    %v702 = vmax.f32 %v686, %v694
    %v703 = vmax.f32 %v687, %v695
    %v704 = vmax.f32 %v688, %v696
    %v705 = vmax.f32 %v689, %v697
    %v706 = vmax.f32 %v690, %v698
    %vm707 = vcmp.lt.s32.totalorder %v24, 5
    %vm708 = vmand %vm429, %vm707
    %v709 = vsel %vm708, 1, 0
    %vm710 = vcmp.eq.s32.totalorder %v709, 1
    %v719 = vrot.slane %v700, 7
    %v720 = vsel %vm282, %v719, %v699
    %v721 = vrot.slane %v701, 6
    %v722 = vsel %vm285, %v721, %v720
    %v723 = vrot.slane %v702, 5
    %v724 = vsel %vm288, %v723, %v722
    %v725 = vrot.slane %v703, 4
    %v726 = vsel %vm291, %v725, %v724
    %v727 = vrot.slane %v704, 3
    %v728 = vsel %vm294, %v727, %v726
    %v729 = vrot.slane %v705, 2
    %v730 = vsel %vm297, %v729, %v728
    %v731 = vrot.slane %v706, 1
    %v732 = vsel %vm300, %v731, %v730
    %v734 = vsel %vm710, %v732, -inf
    %v735 = vsel %vm303, %v734, -inf
    %736 = vmax.xlane.f32.xlu0 %v735
    %v737 = vpop.xlane.xlu0 %736
    %vm738 = vcmp.ge.s32.totalorder %v24, 5
    %vm739 = vcmp.lt.s32.totalorder %v24, 11
    %vm740 = vmand %vm738, %vm739
    %v741 = vsel %vm740, 1, 0
    %vm742 = vcmp.eq.s32.totalorder %v741, 1
    %v743 = vsel %vm742, %v732, -inf
    %v744 = vsel %vm303, %v743, -inf
    %745 = vmax.xlane.f32.xlu0 %v744
    %v746 = vpop.xlane.xlu0 %745
    %vm747 = vcmp.ge.s32.totalorder %v24, 11
    %vm748 = vmand %vm747, %vm462
    %v749 = vsel %vm748, 1, 0
    %vm750 = vcmp.eq.s32.totalorder %v749, 1
    %v751 = vsel %vm750, %v732, -inf
    %v752 = vsel %vm303, %v751, -inf
    %753 = vmax.xlane.f32.xlu0 %v752
    %v754 = vpop.xlane.xlu0 %753
    %v755 = vsel %vm307, %v737, %v746
    %vm756 = vcmask 15360
    %v757 = vsel %vm756, %v755, %v754
    %759 = vrot.lane.b32.xlu0 %v757, 5
    %v760 = vpop.permute.xlu0 %759
    %vm762 = vcmask 64552
    %763 = vst.msk [vmem:[#allocation5] sm:$0xff] %vm762, %v760
    %v764 = vld [vmem:[#allocation2 + $0x5] sm:$0x1]
    %v765 = vld [vmem:[#allocation2 + $0x15] sm:$0x1]
    %v766 = vld [vmem:[#allocation2 + $0x25] sm:$0x1]
    %v767 = vld [vmem:[#allocation2 + $0x35] sm:$0x1]
    %v768 = vld [vmem:[#allocation2 + $0x45] sm:$0x1]
    %v769 = vld [vmem:[#allocation2 + $0x55] sm:$0x1]
    %v770 = vld [vmem:[#allocation2 + $0x65] sm:$0x1]
    %v771 = vld [vmem:[#allocation2 + $0x75] sm:$0x1]
    %v772 = vld [vmem:[#allocation2 + $0x6] sm:$0x1]
    %v773 = vld [vmem:[#allocation2 + $0x16] sm:$0x1]
    %v774 = vld [vmem:[#allocation2 + $0x26] sm:$0x1]
    %v775 = vld [vmem:[#allocation2 + $0x36] sm:$0x1]
    %v776 = vld [vmem:[#allocation2 + $0x46] sm:$0x1]
    %v777 = vld [vmem:[#allocation2 + $0x56] sm:$0x1]
    %v778 = vld [vmem:[#allocation2 + $0x66] sm:$0x1]
    %v779 = vld [vmem:[#allocation2 + $0x76] sm:$0x1]
    %v780 = vmax.f32 %v764, %v772
    %v781 = vmax.f32 %v765, %v773
    %v782 = vmax.f32 %v766, %v774
    %v783 = vmax.f32 %v767, %v775
    %v784 = vmax.f32 %v768, %v776
    %v785 = vmax.f32 %v769, %v777
    %v786 = vmax.f32 %v770, %v778
    %v787 = vmax.f32 %v771, %v779
    %v788 = vld [vmem:[#allocation2 + $0x7] sm:$0x1]
    %v789 = vld [vmem:[#allocation2 + $0x17] sm:$0x1]
    %v790 = vld [vmem:[#allocation2 + $0x27] sm:$0x1]
    %v791 = vld [vmem:[#allocation2 + $0x37] sm:$0x1]
    %v792 = vld [vmem:[#allocation2 + $0x47] sm:$0x1]
    %v793 = vld [vmem:[#allocation2 + $0x57] sm:$0x1]
    %v794 = vld [vmem:[#allocation2 + $0x67] sm:$0x1]
    %v795 = vld [vmem:[#allocation2 + $0x77] sm:$0x1]
    %v796 = vmax.f32 %v780, %v788
    %v797 = vmax.f32 %v781, %v789
    %v798 = vmax.f32 %v782, %v790
    %v799 = vmax.f32 %v783, %v791
    %v800 = vmax.f32 %v784, %v792
    %v801 = vmax.f32 %v785, %v793
    %v802 = vmax.f32 %v786, %v794
    %v803 = vmax.f32 %v787, %v795
    %v804 = vld [vmem:[#allocation2 + $0x8] sm:$0x1]
    %v805 = vld [vmem:[#allocation2 + $0x18] sm:$0x1]
    %v806 = vld [vmem:[#allocation2 + $0x28] sm:$0x1]
    %v807 = vld [vmem:[#allocation2 + $0x38] sm:$0x1]
    %v808 = vld [vmem:[#allocation2 + $0x48] sm:$0x1]
    %v809 = vld [vmem:[#allocation2 + $0x58] sm:$0x1]
    %v810 = vld [vmem:[#allocation2 + $0x68] sm:$0x1]
    %v811 = vld [vmem:[#allocation2 + $0x78] sm:$0x1]
    %v812 = vmax.f32 %v796, %v804
    %v813 = vmax.f32 %v797, %v805
    %v814 = vmax.f32 %v798, %v806
    %v815 = vmax.f32 %v799, %v807
    %v816 = vmax.f32 %v800, %v808
    %v817 = vmax.f32 %v801, %v809
    %v818 = vmax.f32 %v802, %v810
    %v819 = vmax.f32 %v803, %v811
    %v820 = vld [vmem:[#allocation2 + $0x9] sm:$0x1]
    %v821 = vld [vmem:[#allocation2 + $0x19] sm:$0x1]
    %v822 = vld [vmem:[#allocation2 + $0x29] sm:$0x1]
    %v823 = vld [vmem:[#allocation2 + $0x39] sm:$0x1]
    %v824 = vld [vmem:[#allocation2 + $0x49] sm:$0x1]
    %v825 = vld [vmem:[#allocation2 + $0x59] sm:$0x1]
    %v826 = vld [vmem:[#allocation2 + $0x69] sm:$0x1]
    %v827 = vld [vmem:[#allocation2 + $0x79] sm:$0x1]
    %v828 = vmax.f32 %v812, %v820
    %v829 = vmax.f32 %v813, %v821
    %v830 = vmax.f32 %v814, %v822
    %v831 = vmax.f32 %v815, %v823
    %v832 = vmax.f32 %v816, %v824
    %v833 = vmax.f32 %v817, %v825
    %v834 = vmax.f32 %v818, %v826
    %v835 = vmax.f32 %v819, %v827
    %v836 = vld [vmem:[#allocation2 + $0xa] sm:$0x1]
    %v837 = vld [vmem:[#allocation2 + $0x1a] sm:$0x1]
    %v838 = vld [vmem:[#allocation2 + $0x2a] sm:$0x1]
    %v839 = vld [vmem:[#allocation2 + $0x3a] sm:$0x1]
    %v840 = vld [vmem:[#allocation2 + $0x4a] sm:$0x1]
    %v841 = vld [vmem:[#allocation2 + $0x5a] sm:$0x1]
    %v842 = vld [vmem:[#allocation2 + $0x6a] sm:$0x1]
    %v843 = vld [vmem:[#allocation2 + $0x7a] sm:$0x1]
    %v844 = vmax.f32 %v828, %v836
    %v845 = vmax.f32 %v829, %v837
    %v846 = vmax.f32 %v830, %v838
    %v847 = vmax.f32 %v831, %v839
    %v848 = vmax.f32 %v832, %v840
    %v849 = vmax.f32 %v833, %v841
    %v850 = vmax.f32 %v834, %v842
    %v851 = vmax.f32 %v835, %v843
    %v860 = vrot.slane %v845, 7
    %v861 = vsel %vm282, %v860, %v844
    %v862 = vrot.slane %v846, 6
    %v863 = vsel %vm285, %v862, %v861
    %v864 = vrot.slane %v847, 5
    %v865 = vsel %vm288, %v864, %v863
    %v866 = vrot.slane %v848, 4
    %v867 = vsel %vm291, %v866, %v865
    %v868 = vrot.slane %v849, 3
    %v869 = vsel %vm294, %v868, %v867
    %v870 = vrot.slane %v850, 2
    %v871 = vsel %vm297, %v870, %v869
    %v872 = vrot.slane %v851, 1
    %v873 = vsel %vm300, %v872, %v871
    %v875 = vsel %vm710, %v873, -inf
    %v876 = vsel %vm303, %v875, -inf
    %877 = vmax.xlane.f32.xlu0 %v876
    %v878 = vpop.xlane.xlu0 %877
    %v879 = vsel %vm742, %v873, -inf
    %v880 = vsel %vm303, %v879, -inf
    %881 = vmax.xlane.f32.xlu0 %v880
    %v882 = vpop.xlane.xlu0 %881
    %v883 = vsel %vm750, %v873, -inf
    %v884 = vsel %vm303, %v883, -inf
    %885 = vmax.xlane.f32.xlu0 %v884
    %v886 = vpop.xlane.xlu0 %885
    %v887 = vsel %vm307, %v878, %v882
    %v888 = vsel %vm756, %v887, %v886
    %890 = vrot.lane.b32.xlu0 %v888, 8
    %v891 = vpop.permute.xlu0 %890
    %vm893 = vcmask 89152
    %894 = vst.msk [vmem:[#allocation5] sm:$0xff] %vm893, %v891
    %v895 = vld [vmem:[#allocation2 + $0xb] sm:$0x1]
    %v896 = vld [vmem:[#allocation2 + $0x1b] sm:$0x1]
    %v897 = vld [vmem:[#allocation2 + $0x2b] sm:$0x1]
    %v898 = vld [vmem:[#allocation2 + $0x3b] sm:$0x1]
    %v899 = vld [vmem:[#allocation2 + $0x4b] sm:$0x1]
    %v900 = vld [vmem:[#allocation2 + $0x5b] sm:$0x1]
    %v901 = vld [vmem:[#allocation2 + $0x6b] sm:$0x1]
    %v902 = vld [vmem:[#allocation2 + $0x7b] sm:$0x1]
    %v903 = vld [vmem:[#allocation2 + $0xc] sm:$0x1]
    %v904 = vld [vmem:[#allocation2 + $0x1c] sm:$0x1]
    %v905 = vld [vmem:[#allocation2 + $0x2c] sm:$0x1]
    %v906 = vld [vmem:[#allocation2 + $0x3c] sm:$0x1]
    %v907 = vld [vmem:[#allocation2 + $0x4c] sm:$0x1]
    %v908 = vld [vmem:[#allocation2 + $0x5c] sm:$0x1]
    %v909 = vld [vmem:[#allocation2 + $0x6c] sm:$0x1]
    %v910 = vld [vmem:[#allocation2 + $0x7c] sm:$0x1]
    %v911 = vmax.f32 %v895, %v903
    %v912 = vmax.f32 %v896, %v904
    %v913 = vmax.f32 %v897, %v905
    %v914 = vmax.f32 %v898, %v906
    %v915 = vmax.f32 %v899, %v907
    %v916 = vmax.f32 %v900, %v908
    %v917 = vmax.f32 %v901, %v909
    %v918 = vmax.f32 %v902, %v910
    %v919 = vld [vmem:[#allocation2 + $0xd] sm:$0x1]
    %v920 = vld [vmem:[#allocation2 + $0x1d] sm:$0x1]
    %v921 = vld [vmem:[#allocation2 + $0x2d] sm:$0x1]
    %v922 = vld [vmem:[#allocation2 + $0x3d] sm:$0x1]
    %v923 = vld [vmem:[#allocation2 + $0x4d] sm:$0x1]
    %v924 = vld [vmem:[#allocation2 + $0x5d] sm:$0x1]
    %v925 = vld [vmem:[#allocation2 + $0x6d] sm:$0x1]
    %v926 = vld [vmem:[#allocation2 + $0x7d] sm:$0x1]
    %v927 = vmax.f32 %v911, %v919
    %v928 = vmax.f32 %v912, %v920
    %v929 = vmax.f32 %v913, %v921
    %v930 = vmax.f32 %v914, %v922
    %v931 = vmax.f32 %v915, %v923
    %v932 = vmax.f32 %v916, %v924
    %v933 = vmax.f32 %v917, %v925
    %v934 = vmax.f32 %v918, %v926
    %v935 = vld [vmem:[#allocation2 + $0xe] sm:$0x1]
    %v936 = vld [vmem:[#allocation2 + $0x1e] sm:$0x1]
    %v937 = vld [vmem:[#allocation2 + $0x2e] sm:$0x1]
    %v938 = vld [vmem:[#allocation2 + $0x3e] sm:$0x1]
    %v939 = vld [vmem:[#allocation2 + $0x4e] sm:$0x1]
    %v940 = vld [vmem:[#allocation2 + $0x5e] sm:$0x1]
    %v941 = vld [vmem:[#allocation2 + $0x6e] sm:$0x1]
    %v942 = vld [vmem:[#allocation2 + $0x7e] sm:$0x1]
    %v943 = vmax.f32 %v927, %v935
    %v944 = vmax.f32 %v928, %v936
    %v945 = vmax.f32 %v929, %v937
    %v946 = vmax.f32 %v930, %v938
    %v947 = vmax.f32 %v931, %v939
    %v948 = vmax.f32 %v932, %v940
    %v949 = vmax.f32 %v933, %v941
    %v950 = vmax.f32 %v934, %v942
    %v951 = vld [vmem:[#allocation2 + $0xf] sm:$0x1]
    %v952 = vld [vmem:[#allocation2 + $0x1f] sm:$0x1]
    %v953 = vld [vmem:[#allocation2 + $0x2f] sm:$0x1]
    %v954 = vld [vmem:[#allocation2 + $0x3f] sm:$0x1]
    %v955 = vld [vmem:[#allocation2 + $0x4f] sm:$0x1]
    %v956 = vld [vmem:[#allocation2 + $0x5f] sm:$0x1]
    %v957 = vld [vmem:[#allocation2 + $0x6f] sm:$0x1]
    %v958 = vld [vmem:[#allocation2 + $0x7f] sm:$0x1]
    %v959 = vmax.f32 %v943, %v951
    %v960 = vmax.f32 %v944, %v952
    %v961 = vmax.f32 %v945, %v953
    %v962 = vmax.f32 %v946, %v954
    %v963 = vmax.f32 %v947, %v955
    %v964 = vmax.f32 %v948, %v956
    %v965 = vmax.f32 %v949, %v957
    %v966 = vmax.f32 %v950, %v958
    %v975 = vrot.slane %v960, 7
    %v976 = vsel %vm282, %v975, %v959
    %v977 = vrot.slane %v961, 6
    %v978 = vsel %vm285, %v977, %v976
    %v979 = vrot.slane %v962, 5
    %v980 = vsel %vm288, %v979, %v978
    %v981 = vrot.slane %v963, 4
    %v982 = vsel %vm291, %v981, %v980
    %v983 = vrot.slane %v964, 3
    %v984 = vsel %vm294, %v983, %v982
    %v985 = vrot.slane %v965, 2
    %v986 = vsel %vm297, %v985, %v984
    %v987 = vrot.slane %v966, 1
    %v988 = vsel %vm300, %v987, %v986
    %v990 = vsel %vm710, %v988, -inf
    %v991 = vsel %vm303, %v990, -inf
    %992 = vmax.xlane.f32.xlu0 %v991
    %v993 = vpop.xlane.xlu0 %992
    %v994 = vsel %vm742, %v988, -inf
    %v995 = vsel %vm303, %v994, -inf
    %996 = vmax.xlane.f32.xlu0 %v995
    %v997 = vpop.xlane.xlu0 %996
    %v998 = vsel %vm750, %v988, -inf
    %v999 = vsel %vm303, %v998, -inf
    %1000 = vmax.xlane.f32.xlu0 %v999
    %v1001 = vpop.xlane.xlu0 %1000
    %v1002 = vsel %vm307, %v993, %v997
    %v1003 = vsel %vm756, %v1002, %v1001
    %1005 = vrot.lane.b32.xlu0 %v1003, 11
    %v1006 = vpop.permute.xlu0 %1005
    %vm1008 = vcmask 113752
    %1009 = vst.msk [vmem:[#allocation5] sm:$0xff] %vm1008, %v1006
    %v1010 = vld [vmem:[#allocation2] sm:$0x1]
    %v1011 = vld [vmem:[#allocation2 + $0x10] sm:$0x1]
    %v1012 = vld [vmem:[#allocation2 + $0x20] sm:$0x1]
    %v1013 = vld [vmem:[#allocation2 + $0x30] sm:$0x1]
    %v1014 = vld [vmem:[#allocation2 + $0x40] sm:$0x1]
    %v1015 = vld [vmem:[#allocation2 + $0x50] sm:$0x1]
    %v1016 = vld [vmem:[#allocation2 + $0x60] sm:$0x1]
    %v1017 = vld [vmem:[#allocation2 + $0x70] sm:$0x1]
    %v1018 = vld [vmem:[#allocation2 + $0x1] sm:$0x1]
    %v1019 = vld [vmem:[#allocation2 + $0x11] sm:$0x1]
    %v1020 = vld [vmem:[#allocation2 + $0x21] sm:$0x1]
    %v1021 = vld [vmem:[#allocation2 + $0x31] sm:$0x1]
    %v1022 = vld [vmem:[#allocation2 + $0x41] sm:$0x1]
    %v1023 = vld [vmem:[#allocation2 + $0x51] sm:$0x1]
    %v1024 = vld [vmem:[#allocation2 + $0x61] sm:$0x1]
    %v1025 = vld [vmem:[#allocation2 + $0x71] sm:$0x1]
    %v1026 = vmax.f32 %v1010, %v1018
    %v1027 = vmax.f32 %v1011, %v1019
    %v1028 = vmax.f32 %v1012, %v1020
    %v1029 = vmax.f32 %v1013, %v1021
    %v1030 = vmax.f32 %v1014, %v1022
    %v1031 = vmax.f32 %v1015, %v1023
    %v1032 = vmax.f32 %v1016, %v1024
    %v1033 = vmax.f32 %v1017, %v1025
    %v1034 = vld [vmem:[#allocation2 + $0x2] sm:$0x1]
    %v1035 = vld [vmem:[#allocation2 + $0x12] sm:$0x1]
    %v1036 = vld [vmem:[#allocation2 + $0x22] sm:$0x1]
    %v1037 = vld [vmem:[#allocation2 + $0x32] sm:$0x1]
    %v1038 = vld [vmem:[#allocation2 + $0x42] sm:$0x1]
    %v1039 = vld [vmem:[#allocation2 + $0x52] sm:$0x1]
    %v1040 = vld [vmem:[#allocation2 + $0x62] sm:$0x1]
    %v1041 = vld [vmem:[#allocation2 + $0x72] sm:$0x1]
    %v1042 = vmax.f32 %v1026, %v1034
    %v1043 = vmax.f32 %v1027, %v1035
    %v1044 = vmax.f32 %v1028, %v1036
    %v1045 = vmax.f32 %v1029, %v1037
    %v1046 = vmax.f32 %v1030, %v1038
    %v1047 = vmax.f32 %v1031, %v1039
    %v1048 = vmax.f32 %v1032, %v1040
    %v1049 = vmax.f32 %v1033, %v1041
    %v1050 = vld [vmem:[#allocation2 + $0x3] sm:$0x1]
    %v1051 = vld [vmem:[#allocation2 + $0x13] sm:$0x1]
    %v1052 = vld [vmem:[#allocation2 + $0x23] sm:$0x1]
    %v1053 = vld [vmem:[#allocation2 + $0x33] sm:$0x1]
    %v1054 = vld [vmem:[#allocation2 + $0x43] sm:$0x1]
    %v1055 = vld [vmem:[#allocation2 + $0x53] sm:$0x1]
    %v1056 = vld [vmem:[#allocation2 + $0x63] sm:$0x1]
    %v1057 = vld [vmem:[#allocation2 + $0x73] sm:$0x1]
    %v1058 = vmax.f32 %v1042, %v1050
    %v1059 = vmax.f32 %v1043, %v1051
    %v1060 = vmax.f32 %v1044, %v1052
    %v1061 = vmax.f32 %v1045, %v1053
    %v1062 = vmax.f32 %v1046, %v1054
    %v1063 = vmax.f32 %v1047, %v1055
    %v1064 = vmax.f32 %v1048, %v1056
    %v1065 = vmax.f32 %v1049, %v1057
    %vm1066 = vcmp.lt.s32.totalorder %v24, 4
    %vm1067 = vmand %vm429, %vm1066
    %v1068 = vsel %vm1067, 1, 0
    %vm1069 = vcmp.eq.s32.totalorder %v1068, 1
    %v1078 = vrot.slane %v1059, 7
    %v1079 = vsel %vm282, %v1078, %v1058
    %v1080 = vrot.slane %v1060, 6
    %v1081 = vsel %vm285, %v1080, %v1079
    %v1082 = vrot.slane %v1061, 5
    %v1083 = vsel %vm288, %v1082, %v1081
    %v1084 = vrot.slane %v1062, 4
    %v1085 = vsel %vm291, %v1084, %v1083
    %v1086 = vrot.slane %v1063, 3
    %v1087 = vsel %vm294, %v1086, %v1085
    %v1088 = vrot.slane %v1064, 2
    %v1089 = vsel %vm297, %v1088, %v1087
    %v1090 = vrot.slane %v1065, 1
    %v1091 = vsel %vm300, %v1090, %v1089
    %v1093 = vsel %vm1069, %v1091, -inf
    %v1094 = vsel %vm303, %v1093, -inf
    %1095 = vmax.xlane.f32.xlu0 %v1094
    %v1096 = vpop.xlane.xlu0 %1095
    %vm1097 = vcmp.ge.s32.totalorder %v24, 4
    %vm1098 = vmand %vm1097, %vm430
    %v1099 = vsel %vm1098, 1, 0
    %vm1100 = vcmp.eq.s32.totalorder %v1099, 1
    %v1101 = vsel %vm1100, %v1091, -inf
    %v1102 = vsel %vm303, %v1101, -inf
    %1103 = vmax.xlane.f32.xlu0 %v1102
    %v1104 = vpop.xlane.xlu0 %1103
    %vm1105 = vcmp.lt.s32.totalorder %v24, 12
    %vm1106 = vmand %vm461, %vm1105
    %v1107 = vsel %vm1106, 1, 0
    %vm1108 = vcmp.eq.s32.totalorder %v1107, 1
    %v1109 = vsel %vm1108, %v1091, -inf
    %v1110 = vsel %vm303, %v1109, -inf
    %1111 = vmax.xlane.f32.xlu0 %v1110
    %v1112 = vpop.xlane.xlu0 %1111
    %vm1113 = vcmp.ge.s32.totalorder %v24, 12
    %vm1114 = vmand %vm1113, %vm462
    %v1115 = vsel %vm1114, 1, 0
    %vm1116 = vcmp.eq.s32.totalorder %v1115, 1
    %v1117 = vsel %vm1116, %v1091, -inf
    %v1118 = vsel %vm303, %v1117, -inf
    %1119 = vmax.xlane.f32.xlu0 %v1118
    %v1120 = vpop.xlane.xlu0 %1119
    %v1121 = vsel %vm307, %v1096, %v1104
    %v1122 = vsel %vm756, %v1121, %v1112
    %vm1123 = vcmask 23552
    %v1124 = vsel %vm1123, %v1122, %v1120
    %1126 = vrot.lane.b32.xlu0 %v1124, 14
    %v1127 = vpop.permute.xlu0 %1126
    %vm1129 = vcmask 146544
    %1130 = vst.msk [vmem:[#allocation5] sm:$0xff] %vm1129, %v1127
    %v1131 = vld [vmem:[#allocation2 + $0x4] sm:$0x1]
    %v1132 = vld [vmem:[#allocation2 + $0x14] sm:$0x1]
    %v1133 = vld [vmem:[#allocation2 + $0x24] sm:$0x1]
    %v1134 = vld [vmem:[#allocation2 + $0x34] sm:$0x1]
    %v1135 = vld [vmem:[#allocation2 + $0x44] sm:$0x1]
    %v1136 = vld [vmem:[#allocation2 + $0x54] sm:$0x1]
    %v1137 = vld [vmem:[#allocation2 + $0x64] sm:$0x1]
    %v1138 = vld [vmem:[#allocation2 + $0x74] sm:$0x1]
    %v1139 = vld [vmem:[#allocation2 + $0x5] sm:$0x1]
    %v1140 = vld [vmem:[#allocation2 + $0x15] sm:$0x1]
    %v1141 = vld [vmem:[#allocation2 + $0x25] sm:$0x1]
    %v1142 = vld [vmem:[#allocation2 + $0x35] sm:$0x1]
    %v1143 = vld [vmem:[#allocation2 + $0x45] sm:$0x1]
    %v1144 = vld [vmem:[#allocation2 + $0x55] sm:$0x1]
    %v1145 = vld [vmem:[#allocation2 + $0x65] sm:$0x1]
    %v1146 = vld [vmem:[#allocation2 + $0x75] sm:$0x1]
    %v1147 = vmax.f32 %v1131, %v1139
    %v1148 = vmax.f32 %v1132, %v1140
    %v1149 = vmax.f32 %v1133, %v1141
    %v1150 = vmax.f32 %v1134, %v1142
    %v1151 = vmax.f32 %v1135, %v1143
    %v1152 = vmax.f32 %v1136, %v1144
    %v1153 = vmax.f32 %v1137, %v1145
    %v1154 = vmax.f32 %v1138, %v1146
    %v1155 = vld [vmem:[#allocation2 + $0x6] sm:$0x1]
    %v1156 = vld [vmem:[#allocation2 + $0x16] sm:$0x1]
    %v1157 = vld [vmem:[#allocation2 + $0x26] sm:$0x1]
    %v1158 = vld [vmem:[#allocation2 + $0x36] sm:$0x1]
    %v1159 = vld [vmem:[#allocation2 + $0x46] sm:$0x1]
    %v1160 = vld [vmem:[#allocation2 + $0x56] sm:$0x1]
    %v1161 = vld [vmem:[#allocation2 + $0x66] sm:$0x1]
    %v1162 = vld [vmem:[#allocation2 + $0x76] sm:$0x1]
    %v1163 = vmax.f32 %v1147, %v1155
    %v1164 = vmax.f32 %v1148, %v1156
    %v1165 = vmax.f32 %v1149, %v1157
    %v1166 = vmax.f32 %v1150, %v1158
    %v1167 = vmax.f32 %v1151, %v1159
    %v1168 = vmax.f32 %v1152, %v1160
    %v1169 = vmax.f32 %v1153, %v1161
    %v1170 = vmax.f32 %v1154, %v1162
    %v1171 = vld [vmem:[#allocation2 + $0x7] sm:$0x1]
    %v1172 = vld [vmem:[#allocation2 + $0x17] sm:$0x1]
    %v1173 = vld [vmem:[#allocation2 + $0x27] sm:$0x1]
    %v1174 = vld [vmem:[#allocation2 + $0x37] sm:$0x1]
    %v1175 = vld [vmem:[#allocation2 + $0x47] sm:$0x1]
    %v1176 = vld [vmem:[#allocation2 + $0x57] sm:$0x1]
    %v1177 = vld [vmem:[#allocation2 + $0x67] sm:$0x1]
    %v1178 = vld [vmem:[#allocation2 + $0x77] sm:$0x1]
    %v1179 = vmax.f32 %v1163, %v1171
    %v1180 = vmax.f32 %v1164, %v1172
    %v1181 = vmax.f32 %v1165, %v1173
    %v1182 = vmax.f32 %v1166, %v1174
    %v1183 = vmax.f32 %v1167, %v1175
    %v1184 = vmax.f32 %v1168, %v1176
    %v1185 = vmax.f32 %v1169, %v1177
    %v1186 = vmax.f32 %v1170, %v1178
    %v1195 = vrot.slane %v1180, 7
    %v1196 = vsel %vm282, %v1195, %v1179
    %v1197 = vrot.slane %v1181, 6
    %v1198 = vsel %vm285, %v1197, %v1196
    %v1199 = vrot.slane %v1182, 5
    %v1200 = vsel %vm288, %v1199, %v1198
    %v1201 = vrot.slane %v1183, 4
    %v1202 = vsel %vm291, %v1201, %v1200
    %v1203 = vrot.slane %v1184, 3
    %v1204 = vsel %vm294, %v1203, %v1202
    %v1205 = vrot.slane %v1185, 2
    %v1206 = vsel %vm297, %v1205, %v1204
    %v1207 = vrot.slane %v1186, 1
    %v1208 = vsel %vm300, %v1207, %v1206
    %v1210 = vsel %vm1069, %v1208, -inf
    %v1211 = vsel %vm303, %v1210, -inf
    %1212 = vmax.xlane.f32.xlu0 %v1211
    %v1213 = vpop.xlane.xlu0 %1212
    %v1214 = vsel %vm1100, %v1208, -inf
    %v1215 = vsel %vm303, %v1214, -inf
    %1216 = vmax.xlane.f32.xlu0 %v1215
    %v1217 = vpop.xlane.xlu0 %1216
    %v1218 = vsel %vm1108, %v1208, -inf
    %v1219 = vsel %vm303, %v1218, -inf
    %1220 = vmax.xlane.f32.xlu0 %v1219
    %v1221 = vpop.xlane.xlu0 %1220
    %v1222 = vsel %vm1116, %v1208, -inf
    %v1223 = vsel %vm303, %v1222, -inf
    %1224 = vmax.xlane.f32.xlu0 %v1223
    %v1225 = vpop.xlane.xlu0 %1224
    %v1226 = vsel %vm307, %v1213, %v1217
    %v1227 = vsel %vm756, %v1226, %v1221
    %v1228 = vsel %vm1123, %v1227, %v1225
    %1230 = vrot.lane.b32.xlu0 %v1228, 18
    %v1231 = vpop.permute.xlu0 %1230
    %vm1233 = vcmask 179344
    %1234 = vst.msk [vmem:[#allocation5] sm:$0xff] %vm1233, %v1231
    %v1235 = vld [vmem:[#allocation2 + $0x8] sm:$0x1]
    %v1236 = vld [vmem:[#allocation2 + $0x18] sm:$0x1]
    %v1237 = vld [vmem:[#allocation2 + $0x28] sm:$0x1]
    %v1238 = vld [vmem:[#allocation2 + $0x38] sm:$0x1]
    %v1239 = vld [vmem:[#allocation2 + $0x48] sm:$0x1]
    %v1240 = vld [vmem:[#allocation2 + $0x58] sm:$0x1]
    %v1241 = vld [vmem:[#allocation2 + $0x68] sm:$0x1]
    %v1242 = vld [vmem:[#allocation2 + $0x78] sm:$0x1]
    %v1243 = vld [vmem:[#allocation2 + $0x9] sm:$0x1]
    %v1244 = vld [vmem:[#allocation2 + $0x19] sm:$0x1]
    %v1245 = vld [vmem:[#allocation2 + $0x29] sm:$0x1]
    %v1246 = vld [vmem:[#allocation2 + $0x39] sm:$0x1]
    %v1247 = vld [vmem:[#allocation2 + $0x49] sm:$0x1]
    %v1248 = vld [vmem:[#allocation2 + $0x59] sm:$0x1]
    %v1249 = vld [vmem:[#allocation2 + $0x69] sm:$0x1]
    %v1250 = vld [vmem:[#allocation2 + $0x79] sm:$0x1]
    %v1251 = vmax.f32 %v1235, %v1243
    %v1252 = vmax.f32 %v1236, %v1244
    %v1253 = vmax.f32 %v1237, %v1245
    %v1254 = vmax.f32 %v1238, %v1246
    %v1255 = vmax.f32 %v1239, %v1247
    %v1256 = vmax.f32 %v1240, %v1248
    %v1257 = vmax.f32 %v1241, %v1249
    %v1258 = vmax.f32 %v1242, %v1250
    %v1259 = vld [vmem:[#allocation2 + $0xa] sm:$0x1]
    %v1260 = vld [vmem:[#allocation2 + $0x1a] sm:$0x1]
    %v1261 = vld [vmem:[#allocation2 + $0x2a] sm:$0x1]
    %v1262 = vld [vmem:[#allocation2 + $0x3a] sm:$0x1]
    %v1263 = vld [vmem:[#allocation2 + $0x4a] sm:$0x1]
    %v1264 = vld [vmem:[#allocation2 + $0x5a] sm:$0x1]
    %v1265 = vld [vmem:[#allocation2 + $0x6a] sm:$0x1]
    %v1266 = vld [vmem:[#allocation2 + $0x7a] sm:$0x1]
    %v1267 = vmax.f32 %v1251, %v1259
    %v1268 = vmax.f32 %v1252, %v1260
    %v1269 = vmax.f32 %v1253, %v1261
    %v1270 = vmax.f32 %v1254, %v1262
    %v1271 = vmax.f32 %v1255, %v1263
    %v1272 = vmax.f32 %v1256, %v1264
    %v1273 = vmax.f32 %v1257, %v1265
    %v1274 = vmax.f32 %v1258, %v1266
    %v1275 = vld [vmem:[#allocation2 + $0xb] sm:$0x1]
    %v1276 = vld [vmem:[#allocation2 + $0x1b] sm:$0x1]
    %v1277 = vld [vmem:[#allocation2 + $0x2b] sm:$0x1]
    %v1278 = vld [vmem:[#allocation2 + $0x3b] sm:$0x1]
    %v1279 = vld [vmem:[#allocation2 + $0x4b] sm:$0x1]
    %v1280 = vld [vmem:[#allocation2 + $0x5b] sm:$0x1]
    %v1281 = vld [vmem:[#allocation2 + $0x6b] sm:$0x1]
    %v1282 = vld [vmem:[#allocation2 + $0x7b] sm:$0x1]
    %v1283 = vmax.f32 %v1267, %v1275
    %v1284 = vmax.f32 %v1268, %v1276
    %v1285 = vmax.f32 %v1269, %v1277
    %v1286 = vmax.f32 %v1270, %v1278
    %v1287 = vmax.f32 %v1271, %v1279
    %v1288 = vmax.f32 %v1272, %v1280
    %v1289 = vmax.f32 %v1273, %v1281
    %v1290 = vmax.f32 %v1274, %v1282
    %v1299 = vrot.slane %v1284, 7
    %v1300 = vsel %vm282, %v1299, %v1283
    %v1301 = vrot.slane %v1285, 6
    %v1302 = vsel %vm285, %v1301, %v1300
    %v1303 = vrot.slane %v1286, 5
    %v1304 = vsel %vm288, %v1303, %v1302
    %v1305 = vrot.slane %v1287, 4
    %v1306 = vsel %vm291, %v1305, %v1304
    %v1307 = vrot.slane %v1288, 3
    %v1308 = vsel %vm294, %v1307, %v1306
    %v1309 = vrot.slane %v1289, 2
    %v1310 = vsel %vm297, %v1309, %v1308
    %v1311 = vrot.slane %v1290, 1
    %v1312 = vsel %vm300, %v1311, %v1310
    %v1314 = vsel %vm1069, %v1312, -inf
    %v1315 = vsel %vm303, %v1314, -inf
    %1316 = vmax.xlane.f32.xlu0 %v1315
    %v1317 = vpop.xlane.xlu0 %1316
    %v1318 = vsel %vm1100, %v1312, -inf
    %v1319 = vsel %vm303, %v1318, -inf
    %1320 = vmax.xlane.f32.xlu0 %v1319
    %v1321 = vpop.xlane.xlu0 %1320
    %v1322 = vsel %vm1108, %v1312, -inf
    %v1323 = vsel %vm303, %v1322, -inf
    %1324 = vmax.xlane.f32.xlu0 %v1323
    %v1325 = vpop.xlane.xlu0 %1324
    %v1326 = vsel %vm1116, %v1312, -inf
    %v1327 = vsel %vm303, %v1326, -inf
    %1328 = vmax.xlane.f32.xlu0 %v1327
    %v1329 = vpop.xlane.xlu0 %1328
    %v1330 = vsel %vm307, %v1317, %v1321
    %v1331 = vsel %vm756, %v1330, %v1325
    %v1332 = vsel %vm1123, %v1331, %v1329
    %1334 = vrot.lane.b32.xlu0 %v1332, 22
    %v1335 = vpop.permute.xlu0 %1334
    %vm1337 = vcmask 212144
    %1338 = vst.msk [vmem:[#allocation5] sm:$0xff] %vm1337, %v1335
    %v1339 = vld [vmem:[#allocation2 + $0xc] sm:$0x1]
    %v1340 = vld [vmem:[#allocation2 + $0x1c] sm:$0x1]
    %v1341 = vld [vmem:[#allocation2 + $0x2c] sm:$0x1]
    %v1342 = vld [vmem:[#allocation2 + $0x3c] sm:$0x1]
    %v1343 = vld [vmem:[#allocation2 + $0x4c] sm:$0x1]
    %v1344 = vld [vmem:[#allocation2 + $0x5c] sm:$0x1]
    %v1345 = vld [vmem:[#allocation2 + $0x6c] sm:$0x1]
    %v1346 = vld [vmem:[#allocation2 + $0x7c] sm:$0x1]
    %v1347 = vld [vmem:[#allocation2 + $0xd] sm:$0x1]
    %v1348 = vld [vmem:[#allocation2 + $0x1d] sm:$0x1]
    %v1349 = vld [vmem:[#allocation2 + $0x2d] sm:$0x1]
    %v1350 = vld [vmem:[#allocation2 + $0x3d] sm:$0x1]
    %v1351 = vld [vmem:[#allocation2 + $0x4d] sm:$0x1]
    %v1352 = vld [vmem:[#allocation2 + $0x5d] sm:$0x1]
    %v1353 = vld [vmem:[#allocation2 + $0x6d] sm:$0x1]
    %v1354 = vld [vmem:[#allocation2 + $0x7d] sm:$0x1]
    %v1355 = vmax.f32 %v1339, %v1347
    %v1356 = vmax.f32 %v1340, %v1348
    %v1357 = vmax.f32 %v1341, %v1349
    %v1358 = vmax.f32 %v1342, %v1350
    %v1359 = vmax.f32 %v1343, %v1351
    %v1360 = vmax.f32 %v1344, %v1352
    %v1361 = vmax.f32 %v1345, %v1353
    %v1362 = vmax.f32 %v1346, %v1354
    %v1363 = vld [vmem:[#allocation2 + $0xe] sm:$0x1]
    %v1364 = vld [vmem:[#allocation2 + $0x1e] sm:$0x1]
    %v1365 = vld [vmem:[#allocation2 + $0x2e] sm:$0x1]
    %v1366 = vld [vmem:[#allocation2 + $0x3e] sm:$0x1]
    %v1367 = vld [vmem:[#allocation2 + $0x4e] sm:$0x1]
    %v1368 = vld [vmem:[#allocation2 + $0x5e] sm:$0x1]
    %v1369 = vld [vmem:[#allocation2 + $0x6e] sm:$0x1]
    %v1370 = vld [vmem:[#allocation2 + $0x7e] sm:$0x1]
    %v1371 = vmax.f32 %v1355, %v1363
    %v1372 = vmax.f32 %v1356, %v1364
    %v1373 = vmax.f32 %v1357, %v1365
    %v1374 = vmax.f32 %v1358, %v1366
    %v1375 = vmax.f32 %v1359, %v1367
    %v1376 = vmax.f32 %v1360, %v1368
    %v1377 = vmax.f32 %v1361, %v1369
    %v1378 = vmax.f32 %v1362, %v1370
    %v1379 = vld [vmem:[#allocation2 + $0xf] sm:$0x1]
    %v1380 = vld [vmem:[#allocation2 + $0x1f] sm:$0x1]
    %v1381 = vld [vmem:[#allocation2 + $0x2f] sm:$0x1]
    %v1382 = vld [vmem:[#allocation2 + $0x3f] sm:$0x1]
    %v1383 = vld [vmem:[#allocation2 + $0x4f] sm:$0x1]
    %v1384 = vld [vmem:[#allocation2 + $0x5f] sm:$0x1]
    %v1385 = vld [vmem:[#allocation2 + $0x6f] sm:$0x1]
    %v1386 = vld [vmem:[#allocation2 + $0x7f] sm:$0x1]
    %v1387 = vmax.f32 %v1371, %v1379
    %v1388 = vmax.f32 %v1372, %v1380
    %v1389 = vmax.f32 %v1373, %v1381
    %v1390 = vmax.f32 %v1374, %v1382
    %v1391 = vmax.f32 %v1375, %v1383
    %v1392 = vmax.f32 %v1376, %v1384
    %v1393 = vmax.f32 %v1377, %v1385
    %v1394 = vmax.f32 %v1378, %v1386
    %v1403 = vrot.slane %v1388, 7
    %v1404 = vsel %vm282, %v1403, %v1387
    %v1405 = vrot.slane %v1389, 6
    %v1406 = vsel %vm285, %v1405, %v1404
    %v1407 = vrot.slane %v1390, 5
    %v1408 = vsel %vm288, %v1407, %v1406
    %v1409 = vrot.slane %v1391, 4
    %v1410 = vsel %vm291, %v1409, %v1408
    %v1411 = vrot.slane %v1392, 3
    %v1412 = vsel %vm294, %v1411, %v1410
    %v1413 = vrot.slane %v1393, 2
    %v1414 = vsel %vm297, %v1413, %v1412
    %v1415 = vrot.slane %v1394, 1
    %v1416 = vsel %vm300, %v1415, %v1414
    %v1418 = vsel %vm1069, %v1416, -inf
    %v1419 = vsel %vm303, %v1418, -inf
    %1420 = vmax.xlane.f32.xlu0 %v1419
    %v1421 = vpop.xlane.xlu0 %1420
    %v1422 = vsel %vm1100, %v1416, -inf
    %v1423 = vsel %vm303, %v1422, -inf
    %1424 = vmax.xlane.f32.xlu0 %v1423
    %v1425 = vpop.xlane.xlu0 %1424
    %v1426 = vsel %vm1108, %v1416, -inf
    %v1427 = vsel %vm303, %v1426, -inf
    %1428 = vmax.xlane.f32.xlu0 %v1427
    %v1429 = vpop.xlane.xlu0 %1428
    %v1430 = vsel %vm1116, %v1416, -inf
    %v1431 = vsel %vm303, %v1430, -inf
    %1432 = vmax.xlane.f32.xlu0 %v1431
    %v1433 = vpop.xlane.xlu0 %1432
    %v1434 = vsel %vm307, %v1421, %v1425
    %v1435 = vsel %vm756, %v1434, %v1429
    %v1436 = vsel %vm1123, %v1435, %v1433
    %1438 = vrot.lane.b32.xlu0 %v1436, 26
    %v1439 = vpop.permute.xlu0 %1438
    %vm1441 = vcmask 244944
    %1442 = vst.msk [vmem:[#allocation5] sm:$0xff] %vm1441, %v1439
    // Predicated region
    $region10: #{tpu_custom_call.1} parent=1 // pred_check
      _
    $region11: #{tpu_custom_call.1} parent=1 // pred_check_branch
      %1444 = sbr.rel (0) target = $region13
    $region12: #{tpu_custom_call.1} parent=1 // pred_region
      %s1446 = ssub.s32 128, 128
      %1447 = vsyncadd [#allocation4], %s1446
      %s1449 = sshll.u32 [#allocation5], 4
      %s1450 = int_to_ptr.vmem [resolvable:$true] %s1449
      %1452 = dma.vmem_to_hbm [thread:$0]  %s1450, 128, %s1, [#allocation4]
    $region13: #{tpu_custom_call.1} parent=1 // pred_fallthru
      _
    // Predicated region
    $region14: #{tpu_custom_call.1} parent=1 // pred_check
      _
    $region15: #{tpu_custom_call.1} parent=1 // pred_check_branch
      %1454 = sbr.rel (0) target = $region17
    $region16: #{tpu_custom_call.1} parent=1 // pred_region
      %1455 = dma.done [#allocation4], 128
    $region17: #{tpu_custom_call.1} parent=1 // pred_fallthru
      _
    %1456 = vsyncpa [#allocation3], 1
    %1457 = vsyncpa [#allocation4], 1

</llo_original>
